<compile_context>
chip_gen: v5e
topology: v5e:2x2
jax: 0.10.0
libtpu: 0.0.40
codegen_flags: <defaults>
</compile_context>

<pallas_src>
import functools

import jax
import jax.numpy as jnp
from jax import lax
from jax.experimental import pallas as pl
from jax.experimental.pallas import tpu as pltpu


def _rcu_kernel(x_ref, w1_ref, b1_ref, w2_ref, b2_ref, mask_ref, o_ref, *, W, HW):
    # x_ref    : (1, C, HW) f32  raw input for one image, spatial dims flattened
    # w1_ref   : (9, C, C)  bf16 conv1 weights, tap-major (kh*3 + kw)
    # b1_ref   : (C, 1)     f32
    # w2_ref   : (9, C, C)  bf16
    # b2_ref   : (C, 1)     f32
    # mask_ref : (9, HW)    f32  per-tap validity mask (1 inside image, 0 = pad)
    # o_ref    : (1, C, HW) f32
    x = x_ref[0]                                   # (C, HW) f32 raw input
    valid = mask_ref[...] != 0.0                   # (9, HW) bool, built once

    def conv3x3(a, w_ref):
        # a: (C, HW) f32 already-activated input; 9 accumulating MXU matmuls.
        acc = None
        for k in range(9):
            dy, dx = k // 3 - 1, k % 3 - 1
            shift = dy * W + dx
            if shift == 0:                         # center tap: no roll, no mask
                tap = a
            else:
                # rolled[p] == a[(p + shift) mod HW]; wrapped / out-of-image
                # lanes are zeroed by the precomputed validity mask.
                tap = pltpu.roll(a, shift=(-shift) % HW, axis=1)
                tap = jnp.where(valid[k:k + 1, :], tap, 0.0)
            contrib = jnp.dot(w_ref[k], tap.astype(jnp.bfloat16),
                              preferred_element_type=jnp.float32)   # (C, HW) f32
            acc = contrib if acc is None else acc + contrib
        return acc

    xr = jnp.maximum(x, 0.0)                                   # relu(x)
    mid = jnp.maximum(conv3x3(xr, w1_ref) + b1_ref[...], 0.0)  # relu(conv1)
    out = conv3x3(mid, w2_ref) + b2_ref[...]                   # conv2
    o_ref[0] = (out + x).astype(o_ref.dtype)                   # residual: raw x


def _vmem_limit_bytes():
    # Per-generation scoped-VMEM budget: ~75% of physical, capped at 100 MiB
    # (=> ~96 MiB on v5e/v6e with 128 MiB, ~48 MiB on v7x with 64 MiB).
    try:
        cap = pltpu.get_tpu_info().vmem_capacity_bytes
        return min(100 * 1024 * 1024, int(cap) * 3 // 4)
    except Exception:
        return 32 * 1024 * 1024


@jax.jit
def residual_conv_unit(x_nchw, w1, b1, w2, b2):
    """x_nchw: (N, C, H, W).  w1/w2: (C, C, 3, 3) OIHW.  b1/b2: (C,)."""
    N, C, H, W = x_nchw.shape
    HW = H * W

    # Contiguous-dim merge: layout-preserving, no HBM pass, stays NCHW order.
    x_flat = x_nchw.reshape(N, C, HW).astype(jnp.float32)

    # (O, I, kh, kw) -> (kh, kw, O, I) -> (9, C, C): tap-major weight blocks so
    # the kernel indexes w_ref[k] with a static first-axis index (no lane
    # slicing).  bf16 MXU operands; f32 accumulation in the kernel.
    w1r = jnp.transpose(w1, (2, 3, 0, 1)).reshape(9, C, C).astype(jnp.bfloat16)
    w2r = jnp.transpose(w2, (2, 3, 0, 1)).reshape(9, C, C).astype(jnp.bfloat16)
    b1c = b1.reshape(C, 1).astype(jnp.float32)
    b2c = b2.reshape(C, 1).astype(jnp.float32)

    # Precomputed per-tap validity mask (9, HW): 1.0 where the 3x3 neighbour
    # lies inside the image (i.e. where PyTorch's zero padding is NOT read).
    col = jnp.arange(HW, dtype=jnp.int32) % W
    row = jnp.arange(HW, dtype=jnp.int32) // W
    mask_rows = []
    for k in range(9):
        dy, dx = k // 3 - 1, k % 3 - 1
        mask_rows.append((row + dy >= 0) & (row + dy < H) &
                         (col + dx >= 0) & (col + dx < W))
    mask = jnp.stack(mask_rows, axis=0).astype(jnp.float32)      # (9, HW)

    flops = 2 * 2 * 9 * HW * C * C * N              # 2 convs, 2 flops / MAC
    bytes_accessed = (2 * N * C * HW * 4            # x read + out write (f32)
                      + 2 * (9 * C * C) * 2         # bf16 weights
                      + 2 * C * 4 + 9 * HW * 4)     # biases + mask

    # TODO(synk): for production DPT sizes (C~256, large H*W) add a row-tile
    # grid axis (also "parallel" for the second v7x TensorCore) with a 1-row
    # halo and global-row masks; unnecessary at this whole-image-in-VMEM shape.
    out_flat = pl.pallas_call(
        functools.partial(_rcu_kernel, W=W, HW=HW),
        out_shape=jax.ShapeDtypeStruct((N, C, HW), jnp.float32),
        grid_spec=pltpu.PrefetchScalarGridSpec(
            num_scalar_prefetch=0,
            grid=(N,),
            in_specs=[
                pl.BlockSpec((1, C, HW), lambda n: (n, 0, 0)),
                pl.BlockSpec((9, C, C), lambda n: (0, 0, 0)),
                pl.BlockSpec((C, 1), lambda n: (0, 0)),
                pl.BlockSpec((9, C, C), lambda n: (0, 0, 0)),
                pl.BlockSpec((C, 1), lambda n: (0, 0)),
                pl.BlockSpec((9, HW), lambda n: (0, 0)),
            ],
            out_specs=pl.BlockSpec((1, C, HW), lambda n: (n, 0, 0)),
        ),
        compiler_params=pltpu.CompilerParams(
            dimension_semantics=("parallel",),
            vmem_limit_bytes=_vmem_limit_bytes()),
        cost_estimate=pl.CostEstimate(
            flops=flops, transcendentals=0, bytes_accessed=bytes_accessed),
    )(x_flat, w1r, b1c, w2r, b2c, mask)

    # Contiguous-dim split back to NCHW: also free.
    return out_flat.reshape(N, C, H, W)


def _reference(x_nchw, w1, b1, w2, b2):
    """Pure-JAX f32 reference (matches torch NCHW / OIHW conv semantics)."""
    def conv(x, w, b):
        y = lax.conv_general_dilated(
            x, w, window_strides=(1, 1), padding=((1, 1), (1, 1)),
            dimension_numbers=("NCHW", "OIHW", "NCHW"))
        return y + b.reshape(1, -1, 1, 1)

    out = jnp.maximum(x_nchw, 0.0)
    out = conv(out, w1, b1)
    out = jnp.maximum(out, 0.0)
    out = conv(out, w2, b2)
    return out + x_nchw


if __name__ == "__main__":
    N, C, H, W = 2, 4, 16, 16  # features = 4

    key = jax.random.PRNGKey(0)
    kx, kw1, kb1, kw2, kb2 = jax.random.split(key, 5)

    x = jax.random.normal(kx, (N, C, H, W), dtype=jnp.float32)

    # Deterministic synthetic parameters (PyTorch-like uniform init scale).
    fan_in = C * 3 * 3
    bound = 1.0 / (fan_in ** 0.5)
    w1 = jax.random.uniform(kw1, (C, C, 3, 3), jnp.float32, -bound, bound)
    b1 = jax.random.uniform(kb1, (C,), jnp.float32, -bound, bound)
    w2 = jax.random.uniform(kw2, (C, C, 3, 3), jnp.float32, -bound, bound)
    b2 = jax.random.uniform(kb2, (C,), jnp.float32, -bound, bound)

    out = jax.block_until_ready(residual_conv_unit(x, w1, b1, w2, b2))
    ref = jax.block_until_ready(_reference(x, w1, b1, w2, b2))

    assert out.shape == (N, C, H, W)
    max_err = float(jnp.max(jnp.abs(out - ref)))
    # bf16 MXU operands with f32 accumulation vs. an all-f32 reference:
    # tolerance loosened accordingly (two chained 3x3 convs).
    assert jnp.allclose(out, ref, atol=3e-2, rtol=3e-2), max_err

    print("KERNEL_OK")
</pallas_src>

<mosaic_0001>
module attributes {stable_mosaic.version = 11 : i64} {
  func.func @_rcu_kernel(%arg0: i32, %arg1: memref<1x4x256xf32, #tpu.memory_space<vmem>>, %arg2: memref<9x4x4xbf16, #tpu.memory_space<vmem>>, %arg3: memref<4x1xf32, #tpu.memory_space<vmem>>, %arg4: memref<9x4x4xbf16, #tpu.memory_space<vmem>>, %arg5: memref<4x1xf32, #tpu.memory_space<vmem>>, %arg6: memref<9x256xf32, #tpu.memory_space<vmem>>, %arg7: memref<1x4x256xf32, #tpu.memory_space<vmem>>) attributes {dimension_semantics = [#tpu.dimension_semantics<parallel>], iteration_bounds = array<i64: 2>, scalar_prefetch = 0 : i64, scratch_operands = 0 : i64, tpu.core_type = #tpu.core_type<tc>, window_params = [{transform_indices = @transform_0, window_bounds = array<i64: 1, 4, 256>}, {pipeline_mode = #tpu.pipeline_mode<synchronous>, transform_indices = @transform_1, window_bounds = array<i64: 9, 4, 4>}, {pipeline_mode = #tpu.pipeline_mode<synchronous>, transform_indices = @transform_2, window_bounds = array<i64: 4, 1>}, {pipeline_mode = #tpu.pipeline_mode<synchronous>, transform_indices = @transform_3, window_bounds = array<i64: 9, 4, 4>}, {pipeline_mode = #tpu.pipeline_mode<synchronous>, transform_indices = @transform_4, window_bounds = array<i64: 4, 1>}, {pipeline_mode = #tpu.pipeline_mode<synchronous>, transform_indices = @transform_5, window_bounds = array<i64: 9, 256>}, {transform_indices = @transform_6, window_bounds = array<i64: 1, 4, 256>}]} {
    %c0 = arith.constant 0 : index
    %c0_0 = arith.constant 0 : index
    %c0_1 = arith.constant 0 : index
    %0 = vector.load %arg1[%c0, %c0_0, %c0_1] : memref<1x4x256xf32, #tpu.memory_space<vmem>>, vector<1x4x256xf32>
    %1 = vector.shape_cast %0 : vector<1x4x256xf32> to vector<4x256xf32>
    %c0_2 = arith.constant 0 : index
    %c0_3 = arith.constant 0 : index
    %2 = vector.load %arg6[%c0_2, %c0_3] : memref<9x256xf32, #tpu.memory_space<vmem>>, vector<9x256xf32>
    %cst = arith.constant 0.000000e+00 : f32
    %3 = vector.broadcast %cst : f32 to vector<9x256xf32>
    %4 = arith.cmpf one, %2, %3 : vector<9x256xf32>
    %cst_4 = arith.constant 0.000000e+00 : f32
    %5 = vector.broadcast %cst_4 : f32 to vector<4x256xf32>
    %6 = arith.maximumf %1, %5 : vector<4x256xf32>
    %c17_i32 = arith.constant 17 : i32
    %7 = tpu.dynamic_rotate %6 by %c17_i32 dim 1 : vector<4x256xf32>, i32 -> vector<4x256xf32>
    %8 = vector.extract_strided_slice %4 {offsets = [0, 0], sizes = [1, 256], strides = [1, 1]} : vector<9x256xi1> to vector<1x256xi1>
    %cst_5 = arith.constant 0.000000e+00 : f32
    %9 = vector.shape_cast %8 : vector<1x256xi1> to vector<1x256xi1>
    %10 = vector.broadcast %9 : vector<1x256xi1> to vector<4x256xi1>
    %11 = vector.broadcast %cst_5 : f32 to vector<4x256xf32>
    %12 = arith.select %10, %7, %11 : vector<4x256xi1>, vector<4x256xf32>
    %c0_6 = arith.constant 0 : index
    %c0_7 = arith.constant 0 : index
    %c0_8 = arith.constant 0 : index
    %13 = vector.load %arg2[%c0_6, %c0_7, %c0_8] : memref<9x4x4xbf16, #tpu.memory_space<vmem>>, vector<1x4x4xbf16>
    %14 = vector.shape_cast %13 : vector<1x4x4xbf16> to vector<4x4xbf16>
    %15 = arith.truncf %12 : vector<4x256xf32> to vector<4x256xbf16>
    %cst_9 = arith.constant dense<0.000000e+00> : vector<4x256xf32>
    %16 = tpu.matmul %14, %15, %cst_9 {dimension_numbers = #tpu.dot_dimension_numbers<[1], [0], [0], [1], [0, 0, 1, 1], [], []>} : vector<4x4xbf16>, vector<4x256xbf16>, vector<4x256xf32> -> vector<4x256xf32>
    %c16_i32 = arith.constant 16 : i32
    %17 = tpu.dynamic_rotate %6 by %c16_i32 dim 1 : vector<4x256xf32>, i32 -> vector<4x256xf32>
    %18 = vector.extract_strided_slice %4 {offsets = [1, 0], sizes = [1, 256], strides = [1, 1]} : vector<9x256xi1> to vector<1x256xi1>
    %cst_10 = arith.constant 0.000000e+00 : f32
    %19 = vector.shape_cast %18 : vector<1x256xi1> to vector<1x256xi1>
    %20 = vector.broadcast %19 : vector<1x256xi1> to vector<4x256xi1>
    %21 = vector.broadcast %cst_10 : f32 to vector<4x256xf32>
    %22 = arith.select %20, %17, %21 : vector<4x256xi1>, vector<4x256xf32>
    %c1 = arith.constant 1 : index
    %c0_11 = arith.constant 0 : index
    %c0_12 = arith.constant 0 : index
    %23 = vector.load %arg2[%c1, %c0_11, %c0_12] : memref<9x4x4xbf16, #tpu.memory_space<vmem>>, vector<1x4x4xbf16>
    %24 = vector.shape_cast %23 : vector<1x4x4xbf16> to vector<4x4xbf16>
    %25 = arith.truncf %22 : vector<4x256xf32> to vector<4x256xbf16>
    %cst_13 = arith.constant dense<0.000000e+00> : vector<4x256xf32>
    %26 = tpu.matmul %24, %25, %cst_13 {dimension_numbers = #tpu.dot_dimension_numbers<[1], [0], [0], [1], [0, 0, 1, 1], [], []>} : vector<4x4xbf16>, vector<4x256xbf16>, vector<4x256xf32> -> vector<4x256xf32>
    %27 = arith.addf %16, %26 : vector<4x256xf32>
    %c15_i32 = arith.constant 15 : i32
    %28 = tpu.dynamic_rotate %6 by %c15_i32 dim 1 : vector<4x256xf32>, i32 -> vector<4x256xf32>
    %29 = vector.extract_strided_slice %4 {offsets = [2, 0], sizes = [1, 256], strides = [1, 1]} : vector<9x256xi1> to vector<1x256xi1>
    %cst_14 = arith.constant 0.000000e+00 : f32
    %30 = vector.shape_cast %29 : vector<1x256xi1> to vector<1x256xi1>
    %31 = vector.broadcast %30 : vector<1x256xi1> to vector<4x256xi1>
    %32 = vector.broadcast %cst_14 : f32 to vector<4x256xf32>
    %33 = arith.select %31, %28, %32 : vector<4x256xi1>, vector<4x256xf32>
    %c2 = arith.constant 2 : index
    %c0_15 = arith.constant 0 : index
    %c0_16 = arith.constant 0 : index
    %34 = vector.load %arg2[%c2, %c0_15, %c0_16] : memref<9x4x4xbf16, #tpu.memory_space<vmem>>, vector<1x4x4xbf16>
    %35 = vector.shape_cast %34 : vector<1x4x4xbf16> to vector<4x4xbf16>
    %36 = arith.truncf %33 : vector<4x256xf32> to vector<4x256xbf16>
    %cst_17 = arith.constant dense<0.000000e+00> : vector<4x256xf32>
    %37 = tpu.matmul %35, %36, %cst_17 {dimension_numbers = #tpu.dot_dimension_numbers<[1], [0], [0], [1], [0, 0, 1, 1], [], []>} : vector<4x4xbf16>, vector<4x256xbf16>, vector<4x256xf32> -> vector<4x256xf32>
    %38 = arith.addf %27, %37 : vector<4x256xf32>
    %c1_i32 = arith.constant 1 : i32
    %39 = tpu.dynamic_rotate %6 by %c1_i32 dim 1 : vector<4x256xf32>, i32 -> vector<4x256xf32>
    %40 = vector.extract_strided_slice %4 {offsets = [3, 0], sizes = [1, 256], strides = [1, 1]} : vector<9x256xi1> to vector<1x256xi1>
    %cst_18 = arith.constant 0.000000e+00 : f32
    %41 = vector.shape_cast %40 : vector<1x256xi1> to vector<1x256xi1>
    %42 = vector.broadcast %41 : vector<1x256xi1> to vector<4x256xi1>
    %43 = vector.broadcast %cst_18 : f32 to vector<4x256xf32>
    %44 = arith.select %42, %39, %43 : vector<4x256xi1>, vector<4x256xf32>
    %c3 = arith.constant 3 : index
    %c0_19 = arith.constant 0 : index
    %c0_20 = arith.constant 0 : index
    %45 = vector.load %arg2[%c3, %c0_19, %c0_20] : memref<9x4x4xbf16, #tpu.memory_space<vmem>>, vector<1x4x4xbf16>
    %46 = vector.shape_cast %45 : vector<1x4x4xbf16> to vector<4x4xbf16>
    %47 = arith.truncf %44 : vector<4x256xf32> to vector<4x256xbf16>
    %cst_21 = arith.constant dense<0.000000e+00> : vector<4x256xf32>
    %48 = tpu.matmul %46, %47, %cst_21 {dimension_numbers = #tpu.dot_dimension_numbers<[1], [0], [0], [1], [0, 0, 1, 1], [], []>} : vector<4x4xbf16>, vector<4x256xbf16>, vector<4x256xf32> -> vector<4x256xf32>
    %49 = arith.addf %38, %48 : vector<4x256xf32>
    %c4 = arith.constant 4 : index
    %c0_22 = arith.constant 0 : index
    %c0_23 = arith.constant 0 : index
    %50 = vector.load %arg2[%c4, %c0_22, %c0_23] : memref<9x4x4xbf16, #tpu.memory_space<vmem>>, vector<1x4x4xbf16>
    %51 = vector.shape_cast %50 : vector<1x4x4xbf16> to vector<4x4xbf16>
    %52 = arith.truncf %6 : vector<4x256xf32> to vector<4x256xbf16>
    %cst_24 = arith.constant dense<0.000000e+00> : vector<4x256xf32>
    %53 = tpu.matmul %51, %52, %cst_24 {dimension_numbers = #tpu.dot_dimension_numbers<[1], [0], [0], [1], [0, 0, 1, 1], [], []>} : vector<4x4xbf16>, vector<4x256xbf16>, vector<4x256xf32> -> vector<4x256xf32>
    %54 = arith.addf %49, %53 : vector<4x256xf32>
    %c255_i32 = arith.constant 255 : i32
    %55 = tpu.dynamic_rotate %6 by %c255_i32 dim 1 : vector<4x256xf32>, i32 -> vector<4x256xf32>
    %56 = vector.extract_strided_slice %4 {offsets = [5, 0], sizes = [1, 256], strides = [1, 1]} : vector<9x256xi1> to vector<1x256xi1>
    %cst_25 = arith.constant 0.000000e+00 : f32
    %57 = vector.shape_cast %56 : vector<1x256xi1> to vector<1x256xi1>
    %58 = vector.broadcast %57 : vector<1x256xi1> to vector<4x256xi1>
    %59 = vector.broadcast %cst_25 : f32 to vector<4x256xf32>
    %60 = arith.select %58, %55, %59 : vector<4x256xi1>, vector<4x256xf32>
    %c5 = arith.constant 5 : index
    %c0_26 = arith.constant 0 : index
    %c0_27 = arith.constant 0 : index
    %61 = vector.load %arg2[%c5, %c0_26, %c0_27] : memref<9x4x4xbf16, #tpu.memory_space<vmem>>, vector<1x4x4xbf16>
    %62 = vector.shape_cast %61 : vector<1x4x4xbf16> to vector<4x4xbf16>
    %63 = arith.truncf %60 : vector<4x256xf32> to vector<4x256xbf16>
    %cst_28 = arith.constant dense<0.000000e+00> : vector<4x256xf32>
    %64 = tpu.matmul %62, %63, %cst_28 {dimension_numbers = #tpu.dot_dimension_numbers<[1], [0], [0], [1], [0, 0, 1, 1], [], []>} : vector<4x4xbf16>, vector<4x256xbf16>, vector<4x256xf32> -> vector<4x256xf32>
    %65 = arith.addf %54, %64 : vector<4x256xf32>
    %c241_i32 = arith.constant 241 : i32
    %66 = tpu.dynamic_rotate %6 by %c241_i32 dim 1 : vector<4x256xf32>, i32 -> vector<4x256xf32>
    %67 = vector.extract_strided_slice %4 {offsets = [6, 0], sizes = [1, 256], strides = [1, 1]} : vector<9x256xi1> to vector<1x256xi1>
    %cst_29 = arith.constant 0.000000e+00 : f32
    %68 = vector.shape_cast %67 : vector<1x256xi1> to vector<1x256xi1>
    %69 = vector.broadcast %68 : vector<1x256xi1> to vector<4x256xi1>
    %70 = vector.broadcast %cst_29 : f32 to vector<4x256xf32>
    %71 = arith.select %69, %66, %70 : vector<4x256xi1>, vector<4x256xf32>
    %c6 = arith.constant 6 : index
    %c0_30 = arith.constant 0 : index
    %c0_31 = arith.constant 0 : index
    %72 = vector.load %arg2[%c6, %c0_30, %c0_31] : memref<9x4x4xbf16, #tpu.memory_space<vmem>>, vector<1x4x4xbf16>
    %73 = vector.shape_cast %72 : vector<1x4x4xbf16> to vector<4x4xbf16>
    %74 = arith.truncf %71 : vector<4x256xf32> to vector<4x256xbf16>
    %cst_32 = arith.constant dense<0.000000e+00> : vector<4x256xf32>
    %75 = tpu.matmul %73, %74, %cst_32 {dimension_numbers = #tpu.dot_dimension_numbers<[1], [0], [0], [1], [0, 0, 1, 1], [], []>} : vector<4x4xbf16>, vector<4x256xbf16>, vector<4x256xf32> -> vector<4x256xf32>
    %76 = arith.addf %65, %75 : vector<4x256xf32>
    %c240_i32 = arith.constant 240 : i32
    %77 = tpu.dynamic_rotate %6 by %c240_i32 dim 1 : vector<4x256xf32>, i32 -> vector<4x256xf32>
    %78 = vector.extract_strided_slice %4 {offsets = [7, 0], sizes = [1, 256], strides = [1, 1]} : vector<9x256xi1> to vector<1x256xi1>
    %cst_33 = arith.constant 0.000000e+00 : f32
    %79 = vector.shape_cast %78 : vector<1x256xi1> to vector<1x256xi1>
    %80 = vector.broadcast %79 : vector<1x256xi1> to vector<4x256xi1>
    %81 = vector.broadcast %cst_33 : f32 to vector<4x256xf32>
    %82 = arith.select %80, %77, %81 : vector<4x256xi1>, vector<4x256xf32>
    %c7 = arith.constant 7 : index
    %c0_34 = arith.constant 0 : index
    %c0_35 = arith.constant 0 : index
    %83 = vector.load %arg2[%c7, %c0_34, %c0_35] : memref<9x4x4xbf16, #tpu.memory_space<vmem>>, vector<1x4x4xbf16>
    %84 = vector.shape_cast %83 : vector<1x4x4xbf16> to vector<4x4xbf16>
    %85 = arith.truncf %82 : vector<4x256xf32> to vector<4x256xbf16>
    %cst_36 = arith.constant dense<0.000000e+00> : vector<4x256xf32>
    %86 = tpu.matmul %84, %85, %cst_36 {dimension_numbers = #tpu.dot_dimension_numbers<[1], [0], [0], [1], [0, 0, 1, 1], [], []>} : vector<4x4xbf16>, vector<4x256xbf16>, vector<4x256xf32> -> vector<4x256xf32>
    %87 = arith.addf %76, %86 : vector<4x256xf32>
    %c239_i32 = arith.constant 239 : i32
    %88 = tpu.dynamic_rotate %6 by %c239_i32 dim 1 : vector<4x256xf32>, i32 -> vector<4x256xf32>
    %89 = vector.extract_strided_slice %4 {offsets = [8, 0], sizes = [1, 256], strides = [1, 1]} : vector<9x256xi1> to vector<1x256xi1>
    %cst_37 = arith.constant 0.000000e+00 : f32
    %90 = vector.shape_cast %89 : vector<1x256xi1> to vector<1x256xi1>
    %91 = vector.broadcast %90 : vector<1x256xi1> to vector<4x256xi1>
    %92 = vector.broadcast %cst_37 : f32 to vector<4x256xf32>
    %93 = arith.select %91, %88, %92 : vector<4x256xi1>, vector<4x256xf32>
    %c8 = arith.constant 8 : index
    %c0_38 = arith.constant 0 : index
    %c0_39 = arith.constant 0 : index
    %94 = vector.load %arg2[%c8, %c0_38, %c0_39] : memref<9x4x4xbf16, #tpu.memory_space<vmem>>, vector<1x4x4xbf16>
    %95 = vector.shape_cast %94 : vector<1x4x4xbf16> to vector<4x4xbf16>
    %96 = arith.truncf %93 : vector<4x256xf32> to vector<4x256xbf16>
    %cst_40 = arith.constant dense<0.000000e+00> : vector<4x256xf32>
    %97 = tpu.matmul %95, %96, %cst_40 {dimension_numbers = #tpu.dot_dimension_numbers<[1], [0], [0], [1], [0, 0, 1, 1], [], []>} : vector<4x4xbf16>, vector<4x256xbf16>, vector<4x256xf32> -> vector<4x256xf32>
    %98 = arith.addf %87, %97 : vector<4x256xf32>
    %c0_41 = arith.constant 0 : index
    %c0_42 = arith.constant 0 : index
    %99 = vector.load %arg3[%c0_41, %c0_42] : memref<4x1xf32, #tpu.memory_space<vmem>>, vector<4x1xf32>
    %100 = vector.broadcast %99 : vector<4x1xf32> to vector<4x256xf32>
    %101 = arith.addf %98, %100 : vector<4x256xf32>
    %cst_43 = arith.constant 0.000000e+00 : f32
    %102 = vector.broadcast %cst_43 : f32 to vector<4x256xf32>
    %103 = arith.maximumf %101, %102 : vector<4x256xf32>
    %c17_i32_44 = arith.constant 17 : i32
    %104 = tpu.dynamic_rotate %103 by %c17_i32_44 dim 1 : vector<4x256xf32>, i32 -> vector<4x256xf32>
    %105 = vector.extract_strided_slice %4 {offsets = [0, 0], sizes = [1, 256], strides = [1, 1]} : vector<9x256xi1> to vector<1x256xi1>
    %cst_45 = arith.constant 0.000000e+00 : f32
    %106 = vector.shape_cast %105 : vector<1x256xi1> to vector<1x256xi1>
    %107 = vector.broadcast %106 : vector<1x256xi1> to vector<4x256xi1>
    %108 = vector.broadcast %cst_45 : f32 to vector<4x256xf32>
    %109 = arith.select %107, %104, %108 : vector<4x256xi1>, vector<4x256xf32>
    %c0_46 = arith.constant 0 : index
    %c0_47 = arith.constant 0 : index
    %c0_48 = arith.constant 0 : index
    %110 = vector.load %arg4[%c0_46, %c0_47, %c0_48] : memref<9x4x4xbf16, #tpu.memory_space<vmem>>, vector<1x4x4xbf16>
    %111 = vector.shape_cast %110 : vector<1x4x4xbf16> to vector<4x4xbf16>
    %112 = arith.truncf %109 : vector<4x256xf32> to vector<4x256xbf16>
    %cst_49 = arith.constant dense<0.000000e+00> : vector<4x256xf32>
    %113 = tpu.matmul %111, %112, %cst_49 {dimension_numbers = #tpu.dot_dimension_numbers<[1], [0], [0], [1], [0, 0, 1, 1], [], []>} : vector<4x4xbf16>, vector<4x256xbf16>, vector<4x256xf32> -> vector<4x256xf32>
    %c16_i32_50 = arith.constant 16 : i32
    %114 = tpu.dynamic_rotate %103 by %c16_i32_50 dim 1 : vector<4x256xf32>, i32 -> vector<4x256xf32>
    %115 = vector.extract_strided_slice %4 {offsets = [1, 0], sizes = [1, 256], strides = [1, 1]} : vector<9x256xi1> to vector<1x256xi1>
    %cst_51 = arith.constant 0.000000e+00 : f32
    %116 = vector.shape_cast %115 : vector<1x256xi1> to vector<1x256xi1>
    %117 = vector.broadcast %116 : vector<1x256xi1> to vector<4x256xi1>
    %118 = vector.broadcast %cst_51 : f32 to vector<4x256xf32>
    %119 = arith.select %117, %114, %118 : vector<4x256xi1>, vector<4x256xf32>
    %c1_52 = arith.constant 1 : index
    %c0_53 = arith.constant 0 : index
    %c0_54 = arith.constant 0 : index
    %120 = vector.load %arg4[%c1_52, %c0_53, %c0_54] : memref<9x4x4xbf16, #tpu.memory_space<vmem>>, vector<1x4x4xbf16>
    %121 = vector.shape_cast %120 : vector<1x4x4xbf16> to vector<4x4xbf16>
    %122 = arith.truncf %119 : vector<4x256xf32> to vector<4x256xbf16>
    %cst_55 = arith.constant dense<0.000000e+00> : vector<4x256xf32>
    %123 = tpu.matmul %121, %122, %cst_55 {dimension_numbers = #tpu.dot_dimension_numbers<[1], [0], [0], [1], [0, 0, 1, 1], [], []>} : vector<4x4xbf16>, vector<4x256xbf16>, vector<4x256xf32> -> vector<4x256xf32>
    %124 = arith.addf %113, %123 : vector<4x256xf32>
    %c15_i32_56 = arith.constant 15 : i32
    %125 = tpu.dynamic_rotate %103 by %c15_i32_56 dim 1 : vector<4x256xf32>, i32 -> vector<4x256xf32>
    %126 = vector.extract_strided_slice %4 {offsets = [2, 0], sizes = [1, 256], strides = [1, 1]} : vector<9x256xi1> to vector<1x256xi1>
    %cst_57 = arith.constant 0.000000e+00 : f32
    %127 = vector.shape_cast %126 : vector<1x256xi1> to vector<1x256xi1>
    %128 = vector.broadcast %127 : vector<1x256xi1> to vector<4x256xi1>
    %129 = vector.broadcast %cst_57 : f32 to vector<4x256xf32>
    %130 = arith.select %128, %125, %129 : vector<4x256xi1>, vector<4x256xf32>
    %c2_58 = arith.constant 2 : index
    %c0_59 = arith.constant 0 : index
    %c0_60 = arith.constant 0 : index
    %131 = vector.load %arg4[%c2_58, %c0_59, %c0_60] : memref<9x4x4xbf16, #tpu.memory_space<vmem>>, vector<1x4x4xbf16>
    %132 = vector.shape_cast %131 : vector<1x4x4xbf16> to vector<4x4xbf16>
    %133 = arith.truncf %130 : vector<4x256xf32> to vector<4x256xbf16>
    %cst_61 = arith.constant dense<0.000000e+00> : vector<4x256xf32>
    %134 = tpu.matmul %132, %133, %cst_61 {dimension_numbers = #tpu.dot_dimension_numbers<[1], [0], [0], [1], [0, 0, 1, 1], [], []>} : vector<4x4xbf16>, vector<4x256xbf16>, vector<4x256xf32> -> vector<4x256xf32>
    %135 = arith.addf %124, %134 : vector<4x256xf32>
    %c1_i32_62 = arith.constant 1 : i32
    %136 = tpu.dynamic_rotate %103 by %c1_i32_62 dim 1 : vector<4x256xf32>, i32 -> vector<4x256xf32>
    %137 = vector.extract_strided_slice %4 {offsets = [3, 0], sizes = [1, 256], strides = [1, 1]} : vector<9x256xi1> to vector<1x256xi1>
    %cst_63 = arith.constant 0.000000e+00 : f32
    %138 = vector.shape_cast %137 : vector<1x256xi1> to vector<1x256xi1>
    %139 = vector.broadcast %138 : vector<1x256xi1> to vector<4x256xi1>
    %140 = vector.broadcast %cst_63 : f32 to vector<4x256xf32>
    %141 = arith.select %139, %136, %140 : vector<4x256xi1>, vector<4x256xf32>
    %c3_64 = arith.constant 3 : index
    %c0_65 = arith.constant 0 : index
    %c0_66 = arith.constant 0 : index
    %142 = vector.load %arg4[%c3_64, %c0_65, %c0_66] : memref<9x4x4xbf16, #tpu.memory_space<vmem>>, vector<1x4x4xbf16>
    %143 = vector.shape_cast %142 : vector<1x4x4xbf16> to vector<4x4xbf16>
    %144 = arith.truncf %141 : vector<4x256xf32> to vector<4x256xbf16>
    %cst_67 = arith.constant dense<0.000000e+00> : vector<4x256xf32>
    %145 = tpu.matmul %143, %144, %cst_67 {dimension_numbers = #tpu.dot_dimension_numbers<[1], [0], [0], [1], [0, 0, 1, 1], [], []>} : vector<4x4xbf16>, vector<4x256xbf16>, vector<4x256xf32> -> vector<4x256xf32>
    %146 = arith.addf %135, %145 : vector<4x256xf32>
    %c4_68 = arith.constant 4 : index
    %c0_69 = arith.constant 0 : index
    %c0_70 = arith.constant 0 : index
    %147 = vector.load %arg4[%c4_68, %c0_69, %c0_70] : memref<9x4x4xbf16, #tpu.memory_space<vmem>>, vector<1x4x4xbf16>
    %148 = vector.shape_cast %147 : vector<1x4x4xbf16> to vector<4x4xbf16>
    %149 = arith.truncf %103 : vector<4x256xf32> to vector<4x256xbf16>
    %cst_71 = arith.constant dense<0.000000e+00> : vector<4x256xf32>
    %150 = tpu.matmul %148, %149, %cst_71 {dimension_numbers = #tpu.dot_dimension_numbers<[1], [0], [0], [1], [0, 0, 1, 1], [], []>} : vector<4x4xbf16>, vector<4x256xbf16>, vector<4x256xf32> -> vector<4x256xf32>
    %151 = arith.addf %146, %150 : vector<4x256xf32>
    %c255_i32_72 = arith.constant 255 : i32
    %152 = tpu.dynamic_rotate %103 by %c255_i32_72 dim 1 : vector<4x256xf32>, i32 -> vector<4x256xf32>
    %153 = vector.extract_strided_slice %4 {offsets = [5, 0], sizes = [1, 256], strides = [1, 1]} : vector<9x256xi1> to vector<1x256xi1>
    %cst_73 = arith.constant 0.000000e+00 : f32
    %154 = vector.shape_cast %153 : vector<1x256xi1> to vector<1x256xi1>
    %155 = vector.broadcast %154 : vector<1x256xi1> to vector<4x256xi1>
    %156 = vector.broadcast %cst_73 : f32 to vector<4x256xf32>
    %157 = arith.select %155, %152, %156 : vector<4x256xi1>, vector<4x256xf32>
    %c5_74 = arith.constant 5 : index
    %c0_75 = arith.constant 0 : index
    %c0_76 = arith.constant 0 : index
    %158 = vector.load %arg4[%c5_74, %c0_75, %c0_76] : memref<9x4x4xbf16, #tpu.memory_space<vmem>>, vector<1x4x4xbf16>
    %159 = vector.shape_cast %158 : vector<1x4x4xbf16> to vector<4x4xbf16>
    %160 = arith.truncf %157 : vector<4x256xf32> to vector<4x256xbf16>
    %cst_77 = arith.constant dense<0.000000e+00> : vector<4x256xf32>
    %161 = tpu.matmul %159, %160, %cst_77 {dimension_numbers = #tpu.dot_dimension_numbers<[1], [0], [0], [1], [0, 0, 1, 1], [], []>} : vector<4x4xbf16>, vector<4x256xbf16>, vector<4x256xf32> -> vector<4x256xf32>
    %162 = arith.addf %151, %161 : vector<4x256xf32>
    %c241_i32_78 = arith.constant 241 : i32
    %163 = tpu.dynamic_rotate %103 by %c241_i32_78 dim 1 : vector<4x256xf32>, i32 -> vector<4x256xf32>
    %164 = vector.extract_strided_slice %4 {offsets = [6, 0], sizes = [1, 256], strides = [1, 1]} : vector<9x256xi1> to vector<1x256xi1>
    %cst_79 = arith.constant 0.000000e+00 : f32
    %165 = vector.shape_cast %164 : vector<1x256xi1> to vector<1x256xi1>
    %166 = vector.broadcast %165 : vector<1x256xi1> to vector<4x256xi1>
    %167 = vector.broadcast %cst_79 : f32 to vector<4x256xf32>
    %168 = arith.select %166, %163, %167 : vector<4x256xi1>, vector<4x256xf32>
    %c6_80 = arith.constant 6 : index
    %c0_81 = arith.constant 0 : index
    %c0_82 = arith.constant 0 : index
    %169 = vector.load %arg4[%c6_80, %c0_81, %c0_82] : memref<9x4x4xbf16, #tpu.memory_space<vmem>>, vector<1x4x4xbf16>
    %170 = vector.shape_cast %169 : vector<1x4x4xbf16> to vector<4x4xbf16>
    %171 = arith.truncf %168 : vector<4x256xf32> to vector<4x256xbf16>
    %cst_83 = arith.constant dense<0.000000e+00> : vector<4x256xf32>
    %172 = tpu.matmul %170, %171, %cst_83 {dimension_numbers = #tpu.dot_dimension_numbers<[1], [0], [0], [1], [0, 0, 1, 1], [], []>} : vector<4x4xbf16>, vector<4x256xbf16>, vector<4x256xf32> -> vector<4x256xf32>
    %173 = arith.addf %162, %172 : vector<4x256xf32>
    %c240_i32_84 = arith.constant 240 : i32
    %174 = tpu.dynamic_rotate %103 by %c240_i32_84 dim 1 : vector<4x256xf32>, i32 -> vector<4x256xf32>
    %175 = vector.extract_strided_slice %4 {offsets = [7, 0], sizes = [1, 256], strides = [1, 1]} : vector<9x256xi1> to vector<1x256xi1>
    %cst_85 = arith.constant 0.000000e+00 : f32
    %176 = vector.shape_cast %175 : vector<1x256xi1> to vector<1x256xi1>
    %177 = vector.broadcast %176 : vector<1x256xi1> to vector<4x256xi1>
    %178 = vector.broadcast %cst_85 : f32 to vector<4x256xf32>
    %179 = arith.select %177, %174, %178 : vector<4x256xi1>, vector<4x256xf32>
    %c7_86 = arith.constant 7 : index
    %c0_87 = arith.constant 0 : index
    %c0_88 = arith.constant 0 : index
    %180 = vector.load %arg4[%c7_86, %c0_87, %c0_88] : memref<9x4x4xbf16, #tpu.memory_space<vmem>>, vector<1x4x4xbf16>
    %181 = vector.shape_cast %180 : vector<1x4x4xbf16> to vector<4x4xbf16>
    %182 = arith.truncf %179 : vector<4x256xf32> to vector<4x256xbf16>
    %cst_89 = arith.constant dense<0.000000e+00> : vector<4x256xf32>
    %183 = tpu.matmul %181, %182, %cst_89 {dimension_numbers = #tpu.dot_dimension_numbers<[1], [0], [0], [1], [0, 0, 1, 1], [], []>} : vector<4x4xbf16>, vector<4x256xbf16>, vector<4x256xf32> -> vector<4x256xf32>
    %184 = arith.addf %173, %183 : vector<4x256xf32>
    %c239_i32_90 = arith.constant 239 : i32
    %185 = tpu.dynamic_rotate %103 by %c239_i32_90 dim 1 : vector<4x256xf32>, i32 -> vector<4x256xf32>
    %186 = vector.extract_strided_slice %4 {offsets = [8, 0], sizes = [1, 256], strides = [1, 1]} : vector<9x256xi1> to vector<1x256xi1>
    %cst_91 = arith.constant 0.000000e+00 : f32
    %187 = vector.shape_cast %186 : vector<1x256xi1> to vector<1x256xi1>
    %188 = vector.broadcast %187 : vector<1x256xi1> to vector<4x256xi1>
    %189 = vector.broadcast %cst_91 : f32 to vector<4x256xf32>
    %190 = arith.select %188, %185, %189 : vector<4x256xi1>, vector<4x256xf32>
    %c8_92 = arith.constant 8 : index
    %c0_93 = arith.constant 0 : index
    %c0_94 = arith.constant 0 : index
    %191 = vector.load %arg4[%c8_92, %c0_93, %c0_94] : memref<9x4x4xbf16, #tpu.memory_space<vmem>>, vector<1x4x4xbf16>
    %192 = vector.shape_cast %191 : vector<1x4x4xbf16> to vector<4x4xbf16>
    %193 = arith.truncf %190 : vector<4x256xf32> to vector<4x256xbf16>
    %cst_95 = arith.constant dense<0.000000e+00> : vector<4x256xf32>
    %194 = tpu.matmul %192, %193, %cst_95 {dimension_numbers = #tpu.dot_dimension_numbers<[1], [0], [0], [1], [0, 0, 1, 1], [], []>} : vector<4x4xbf16>, vector<4x256xbf16>, vector<4x256xf32> -> vector<4x256xf32>
    %195 = arith.addf %184, %194 : vector<4x256xf32>
    %c0_96 = arith.constant 0 : index
    %c0_97 = arith.constant 0 : index
    %196 = vector.load %arg5[%c0_96, %c0_97] : memref<4x1xf32, #tpu.memory_space<vmem>>, vector<4x1xf32>
    %197 = vector.broadcast %196 : vector<4x1xf32> to vector<4x256xf32>
    %198 = arith.addf %195, %197 : vector<4x256xf32>
    %199 = arith.addf %198, %1 : vector<4x256xf32>
    %c0_98 = arith.constant 0 : index
    %c0_99 = arith.constant 0 : index
    %c0_100 = arith.constant 0 : index
    %200 = vector.load %arg7[%c0_98, %c0_99, %c0_100] : memref<1x4x256xf32, #tpu.memory_space<vmem>>, vector<1x4x256xf32>
    %201 = vector.shape_cast %200 : vector<1x4x256xf32> to vector<4x256xf32>
    %202 = vector.shape_cast %199 : vector<4x256xf32> to vector<1x4x256xf32>
    tpu.vector_store %arg7[%c0_98, %c0_99, %c0_100], %202 {strides = array<i32>} : memref<1x4x256xf32, #tpu.memory_space<vmem>>, vector<1x4x256xf32>,
    return
  }
  func.func @transform_0(%arg0: i32) -> (i32, i32, i32) {
    %c0_i32 = arith.constant 0 : i32
    %c0_i32_0 = arith.constant 0 : i32
    %c0_i32_1 = arith.constant 0 : i32
    return %arg0, %c0_i32, %c0_i32_0 : i32, i32, i32
  }
  func.func @transform_1(%arg0: i32) -> (i32, i32, i32) {
    %c0_i32 = arith.constant 0 : i32
    %c0_i32_0 = arith.constant 0 : i32
    %c0_i32_1 = arith.constant 0 : i32
    %c0_i32_2 = arith.constant 0 : i32
    return %c0_i32, %c0_i32_0, %c0_i32_1 : i32, i32, i32
  }
  func.func @transform_2(%arg0: i32) -> (i32, i32) {
    %c0_i32 = arith.constant 0 : i32
    %c0_i32_0 = arith.constant 0 : i32
    %c0_i32_1 = arith.constant 0 : i32
    return %c0_i32, %c0_i32_0 : i32, i32
  }
  func.func @transform_3(%arg0: i32) -> (i32, i32, i32) {
    %c0_i32 = arith.constant 0 : i32
    %c0_i32_0 = arith.constant 0 : i32
    %c0_i32_1 = arith.constant 0 : i32
    %c0_i32_2 = arith.constant 0 : i32
    return %c0_i32, %c0_i32_0, %c0_i32_1 : i32, i32, i32
  }
  func.func @transform_4(%arg0: i32) -> (i32, i32) {
    %c0_i32 = arith.constant 0 : i32
    %c0_i32_0 = arith.constant 0 : i32
    %c0_i32_1 = arith.constant 0 : i32
    return %c0_i32, %c0_i32_0 : i32, i32
  }
  func.func @transform_5(%arg0: i32) -> (i32, i32) {
    %c0_i32 = arith.constant 0 : i32
    %c0_i32_0 = arith.constant 0 : i32
    %c0_i32_1 = arith.constant 0 : i32
    return %c0_i32, %c0_i32_0 : i32, i32
  }
  func.func @transform_6(%arg0: i32) -> (i32, i32, i32) {
    %c0_i32 = arith.constant 0 : i32
    %c0_i32_0 = arith.constant 0 : i32
    %c0_i32_1 = arith.constant 0 : i32
    return %arg0, %c0_i32, %c0_i32_0 : i32, i32, i32
  }
}

</mosaic_0001>

<llo_original>
// kernel: residual_conv_unit.1
$region0: #{residual_conv_unit.1}
  #allocation0 [shape = 'u32[]', space=smem, size = 0x4, offset = 0x4, fixed_abs, tag = 'smem constant byte address 0x4 - core index']
  #allocation1 [shape = 'u32[72,128]{1,0:T(1,128)}', space=vmem, size = 0x9000, scoped, tag = 'internal scratch']
  %s0 = inlined_call_operand.vmem [shape: f32[2,4,256], index: 0, kind: input, shape index: {}]
  %s1 = inlined_call_operand.vmem [shape: bf16[9,4,4], index: 1, kind: input, shape index: {}]
  %s2 = inlined_call_operand.vmem [shape: f32[4,1], index: 2, kind: input, shape index: {}]
  %s3 = inlined_call_operand.vmem [shape: bf16[9,4,4], index: 3, kind: input, shape index: {}]
  %s4 = inlined_call_operand.vmem [shape: f32[4,1], index: 4, kind: input, shape index: {}]
  %s5 = inlined_call_operand.vmem [shape: f32[9,256], index: 5, kind: input, shape index: {}]
  %s6 = inlined_call_operand.vmem [shape: f32[2,4,256], index: 6, kind: output, shape index: {}]
  %s7 = sld [smem:[#allocation0]]
  $region57: #{residual_conv_unit.1} parent=0
    _
  %s9 = ssub.s32 1, %s7
  %s10 = scalar_select 0, %s9, %s7
  loop: start=0, step=1, limit=4
  $region2: #{residual_conv_unit.1} parent=0 // loop_pre_header
    _
  $region3: #{residual_conv_unit.1} parent=0 // loop_header
    %s12 = sphi 0, %s16
    %p13 = scmp.ge.s32.totalorder %s12, 4
    %s22 = sphi 0, %s24
    %s25 = sphi 0, %s22
    %s26 = sphi 0, %s25
    %s42 = sphi 0, %s26
    %s46 = sphi 0, %s46
    %s48 = sphi 0, %s46
    %s49 = sphi 0, %s48
    %s63 = sphi 0, %s49
    %s67 = sphi 0, %s67
    %s69 = sphi 0, %s67
    %s70 = sphi 0, %s69
    %s84 = sphi 0, %s70
    %s88 = sphi 0, %s88
    %s90 = sphi 0, %s88
    %s91 = sphi 0, %s90
    %s105 = sphi 0, %s91
    %s109 = sphi 0, %s109
    %s111 = sphi 0, %s109
    %s112 = sphi 0, %s111
    %s126 = sphi 0, %s112
    %s130 = sphi 0, %s130
    %s132 = sphi 0, %s130
    %s133 = sphi 0, %s132
    %s147 = sphi 0, %s133
    %s153 = sphi 0, %s155
    %s156 = sphi 0, %s153
    %s157 = sphi 0, %s156
    %s173 = sphi 0, %s157
  $region4: #{residual_conv_unit.1} parent=0 // loop_header_branch
    %15 = sbr.rel (%p13) target = $region8
  $region5: #{residual_conv_unit.1} parent=0 // loop_body
    %s17 = ssub.s32 %s12, 1
    %s18 = ssub.s32 %s12, 2
    %s19 = sadd.s32 %s12, 1
    %s20 = ssub.s32 %s12, %s19
    %p21 = scmp.eq.s32.totalorder %s20, 0
    %s23 = sadd.s32 %s22, 1
    %s24 = scalar_select %p21, %s22, %s23
    %p27 = pneg %p21
    %p28 = scmp.eq.s32.totalorder %s12, 1
    %p29 = por %p27, %p28
    %p30 = scmp.ne.s32.totalorder %s22, %s25
    %p31 = scmp.eq.s32.totalorder %s12, 0
    %p32 = por %p30, %p31
    %p33 = scmp.ne.s32.totalorder %s22, %s25
    %p34 = scmp.eq.s32.totalorder %s17, 1
    %p35 = por %p33, %p34
    %p36 = scmp.ne.s32.totalorder %s25, %s26
    %p37 = scmp.eq.s32.totalorder %s17, 0
    %p38 = por %p36, %p37
    %p39 = scmp.ne.s32.totalorder %s25, %s26
    %p40 = scmp.eq.s32.totalorder %s18, 1
    %p41 = por %p39, %p40
    %p43 = scmp.ne.s32.totalorder %s26, %s42
    %p44 = scmp.eq.s32.totalorder %s18, 0
    %p45 = por %p43, %p44
    %s47 = sadd.s32 %s46, 1
    %p50 = scmp.eq.s32.totalorder %s12, 1
    %p51 = scmp.ne.s32.totalorder %s46, %s48
    %p52 = scmp.eq.s32.totalorder %s12, 0
    %p53 = por %p51, %p52
    %p54 = scmp.ne.s32.totalorder %s46, %s48
    %p55 = scmp.eq.s32.totalorder %s17, 1
    %p56 = por %p54, %p55
    %p57 = scmp.ne.s32.totalorder %s48, %s49
    %p58 = scmp.eq.s32.totalorder %s17, 0
    %p59 = por %p57, %p58
    %p60 = scmp.ne.s32.totalorder %s48, %s49
    %p61 = scmp.eq.s32.totalorder %s18, 1
    %p62 = por %p60, %p61
    %p64 = scmp.ne.s32.totalorder %s49, %s63
    %p65 = scmp.eq.s32.totalorder %s18, 0
    %p66 = por %p64, %p65
    %s68 = sadd.s32 %s67, 1
    %p71 = scmp.eq.s32.totalorder %s12, 1
    %p72 = scmp.ne.s32.totalorder %s67, %s69
    %p73 = scmp.eq.s32.totalorder %s12, 0
    %p74 = por %p72, %p73
    %p75 = scmp.ne.s32.totalorder %s67, %s69
    %p76 = scmp.eq.s32.totalorder %s17, 1
    %p77 = por %p75, %p76
    %p78 = scmp.ne.s32.totalorder %s69, %s70
    %p79 = scmp.eq.s32.totalorder %s17, 0
    %p80 = por %p78, %p79
    %p81 = scmp.ne.s32.totalorder %s69, %s70
    %p82 = scmp.eq.s32.totalorder %s18, 1
    %p83 = por %p81, %p82
    %p85 = scmp.ne.s32.totalorder %s70, %s84
    %p86 = scmp.eq.s32.totalorder %s18, 0
    %p87 = por %p85, %p86
    %s89 = sadd.s32 %s88, 1
    %p92 = scmp.eq.s32.totalorder %s12, 1
    %p93 = scmp.ne.s32.totalorder %s88, %s90
    %p94 = scmp.eq.s32.totalorder %s12, 0
    %p95 = por %p93, %p94
    %p96 = scmp.ne.s32.totalorder %s88, %s90
    %p97 = scmp.eq.s32.totalorder %s17, 1
    %p98 = por %p96, %p97
    %p99 = scmp.ne.s32.totalorder %s90, %s91
    %p100 = scmp.eq.s32.totalorder %s17, 0
    %p101 = por %p99, %p100
    %p102 = scmp.ne.s32.totalorder %s90, %s91
    %p103 = scmp.eq.s32.totalorder %s18, 1
    %p104 = por %p102, %p103
    %p106 = scmp.ne.s32.totalorder %s91, %s105
    %p107 = scmp.eq.s32.totalorder %s18, 0
    %p108 = por %p106, %p107
    %s110 = sadd.s32 %s109, 1
    %p113 = scmp.eq.s32.totalorder %s12, 1
    %p114 = scmp.ne.s32.totalorder %s109, %s111
    %p115 = scmp.eq.s32.totalorder %s12, 0
    %p116 = por %p114, %p115
    %p117 = scmp.ne.s32.totalorder %s109, %s111
    %p118 = scmp.eq.s32.totalorder %s17, 1
    %p119 = por %p117, %p118
    %p120 = scmp.ne.s32.totalorder %s111, %s112
    %p121 = scmp.eq.s32.totalorder %s17, 0
    %p122 = por %p120, %p121
    %p123 = scmp.ne.s32.totalorder %s111, %s112
    %p124 = scmp.eq.s32.totalorder %s18, 1
    %p125 = por %p123, %p124
    %p127 = scmp.ne.s32.totalorder %s112, %s126
    %p128 = scmp.eq.s32.totalorder %s18, 0
    %p129 = por %p127, %p128
    %s131 = sadd.s32 %s130, 1
    %p134 = scmp.eq.s32.totalorder %s12, 1
    %p135 = scmp.ne.s32.totalorder %s130, %s132
    %p136 = scmp.eq.s32.totalorder %s12, 0
    %p137 = por %p135, %p136
    %p138 = scmp.ne.s32.totalorder %s130, %s132
    %p139 = scmp.eq.s32.totalorder %s17, 1
    %p140 = por %p138, %p139
    %p141 = scmp.ne.s32.totalorder %s132, %s133
    %p142 = scmp.eq.s32.totalorder %s17, 0
    %p143 = por %p141, %p142
    %p144 = scmp.ne.s32.totalorder %s132, %s133
    %p145 = scmp.eq.s32.totalorder %s18, 1
    %p146 = por %p144, %p145
    %p148 = scmp.ne.s32.totalorder %s133, %s147
    %p149 = scmp.eq.s32.totalorder %s18, 0
    %p150 = por %p148, %p149
    %s151 = ssub.s32 %s12, %s19
    %p152 = scmp.eq.s32.totalorder %s151, 0
    %s154 = sadd.s32 %s153, 1
    %s155 = scalar_select %p152, %s153, %s154
    %p158 = pneg %p152
    %p159 = scmp.eq.s32.totalorder %s12, 1
    %p160 = por %p158, %p159
    %p161 = scmp.ne.s32.totalorder %s153, %s156
    %p162 = scmp.eq.s32.totalorder %s12, 0
    %p163 = por %p161, %p162
    %p164 = scmp.ne.s32.totalorder %s153, %s156
    %p165 = scmp.eq.s32.totalorder %s17, 1
    %p166 = por %p164, %p165
    %p167 = scmp.ne.s32.totalorder %s156, %s157
    %p168 = scmp.eq.s32.totalorder %s17, 0
    %p169 = por %p167, %p168
    %p170 = scmp.ne.s32.totalorder %s156, %s157
    %p171 = scmp.eq.s32.totalorder %s18, 1
    %p172 = por %p170, %p171
    %p174 = scmp.ne.s32.totalorder %s157, %s173
    %p175 = scmp.eq.s32.totalorder %s18, 0
    %p176 = por %p174, %p175
    %p177 = scmp.le.s32.totalorder 1, %s12
    %p178 = scmp.lt.s32.totalorder %s12, 3
    %p179 = pnand %p177, %p178
    %p180 = pneg %p179
    // Predicated region
    $region9: #{residual_conv_unit.1} parent=5 // pred_check
      _
    $region10: #{residual_conv_unit.1} parent=5 // pred_check_branch
      %182 = sbr.rel (%p179) target = $region12
    $region11: #{residual_conv_unit.1} parent=5 // pred_region
      %s183 = ssub.s32 %s12, 1
      // Predicated region
      $region13: #{residual_conv_unit.1} parent=11 // pred_check
        %p184 = pneg %p59
      $region14: #{residual_conv_unit.1} parent=11 // pred_check_branch
        %186 = sbr.rel (%p184) target = $region16
      $region15: #{residual_conv_unit.1} parent=11 // pred_region
        _
      $region16: #{residual_conv_unit.1} parent=11 // pred_fallthru
        _
      // Predicated region
      $region17: #{residual_conv_unit.1} parent=11 // pred_check
        %p187 = pneg %p80
      $region18: #{residual_conv_unit.1} parent=11 // pred_check_branch
        %189 = sbr.rel (%p187) target = $region20
      $region19: #{residual_conv_unit.1} parent=11 // pred_region
        _
      $region20: #{residual_conv_unit.1} parent=11 // pred_fallthru
        _
      // Predicated region
      $region21: #{residual_conv_unit.1} parent=11 // pred_check
        %p190 = pneg %p101
      $region22: #{residual_conv_unit.1} parent=11 // pred_check_branch
        %192 = sbr.rel (%p190) target = $region24
      $region23: #{residual_conv_unit.1} parent=11 // pred_region
        _
      $region24: #{residual_conv_unit.1} parent=11 // pred_fallthru
        _
      // Predicated region
      $region25: #{residual_conv_unit.1} parent=11 // pred_check
        %p193 = pneg %p122
      $region26: #{residual_conv_unit.1} parent=11 // pred_check_branch
        %195 = sbr.rel (%p193) target = $region28
      $region27: #{residual_conv_unit.1} parent=11 // pred_region
        _
      $region28: #{residual_conv_unit.1} parent=11 // pred_fallthru
        _
      // Predicated region
      $region29: #{residual_conv_unit.1} parent=11 // pred_check
        %p196 = pneg %p143
      $region30: #{residual_conv_unit.1} parent=11 // pred_check_branch
        %198 = sbr.rel (%p196) target = $region32
      $region31: #{residual_conv_unit.1} parent=11 // pred_region
        _
      $region32: #{residual_conv_unit.1} parent=11 // pred_fallthru
        _
    $region12: #{residual_conv_unit.1} parent=5 // pred_fallthru
      _
    %p199 = scmp.lt.s32.totalorder %s12, 2
    // Predicated region
    $region33: #{residual_conv_unit.1} parent=5 // pred_check
      %p200 = pneg %p199
    $region34: #{residual_conv_unit.1} parent=5 // pred_check_branch
      %202 = sbr.rel (%p200) target = $region36
    $region35: #{residual_conv_unit.1} parent=5 // pred_region
      // Predicated region
      $region37: #{residual_conv_unit.1} parent=35 // pred_check
        %p203 = pneg %p32
      $region38: #{residual_conv_unit.1} parent=35 // pred_check_branch
        %205 = sbr.rel (%p203) target = $region40
      $region39: #{residual_conv_unit.1} parent=35 // pred_region
        %p206 = scmp.lt.s32.totalorder %s12, 1
        %s207 = scalar_select %p206, %s12, 1
        %s208 = smul.addr %s207, 2
        %s209 = smul.addr %s208, 4
        %s210 = scalar_lea.vmem %s0, %s209
      $region40: #{residual_conv_unit.1} parent=35 // pred_fallthru
        _
    $region36: #{residual_conv_unit.1} parent=5 // pred_fallthru
      _
    %p211 = scmp.le.s32.totalorder 1, %s12
    %p212 = scmp.lt.s32.totalorder %s12, 3
    %p213 = pnand %p211, %p212
    %p214 = pneg %p213
    // Predicated region
    $region41: #{residual_conv_unit.1} parent=5 // pred_check
      _
    $region42: #{residual_conv_unit.1} parent=5 // pred_check_branch
      %216 = sbr.rel (%p213) target = $region44
    $region43: #{residual_conv_unit.1} parent=5 // pred_region
      %s217 = ssub.s32 %s12, 1
      %p218 = scmp.lt.s32.totalorder %s17, 1
      %s219 = scalar_select %p218, %s17, 1
      %s220 = smul.addr %s219, 2
      %s221 = smul.addr %s220, 4
      %s222 = scalar_lea.vmem %s0, %s221
      %p223 = pneg %p38
      %p224 = pneg %p35
      %p225 = pneg %p59
      %p226 = pneg %p56
      %p227 = pneg %p80
      %p228 = pneg %p77
      %p229 = pneg %p101
      %p230 = pneg %p98
      %p231 = pneg %p122
      %p232 = pneg %p119
      %p233 = pneg %p143
      %p234 = pneg %p140
      %p235 = pneg %p169
      %p236 = pneg %p166
      %p237 = scmp.lt.s32.totalorder %s17, 1
      %s238 = scalar_select %p237, %s17, 1
      %s239 = smul.addr %s238, 2
      %s240 = smul.addr %s239, 4
      %s241 = scalar_lea.vmem %s6, %s240
      %p242 = scmp.lt.s32.totalorder %s17, 1
      %s243 = scalar_select %p242, %s17, 1
      %s244 = smul.addr %s243, 2
      %s245 = smul.addr %s244, 4
      %s246 = scalar_lea.vmem %s0, %s245
      %p247 = scmp.lt.s32.totalorder %s17, 1
      %s248 = scalar_select %p247, %s17, 1
      %s249 = smul.addr %s248, 2
      %s250 = smul.addr %s249, 4
      %s251 = scalar_lea.vmem %s6, %s250
      %v253 = vld [vmem:[%s246] sm:$0xff]
      %v254 = vld [vmem:[%s5] sm:$0xff]
      %v255 = vld [vmem:[%s5 + $0x8] sm:$0xff]
      %v256 = vld [vmem:[%s5 + $0x10] sm:$0x1]
      %v257 = vld [vmem:[%s5 + $0x18] sm:$0x1]
      %vm258 = vcmp.ne.f32.partialorder %v254, 0.0
      %vm259 = vcmp.ne.f32.partialorder %v255, 0.0
      %vm260 = vcmp.ne.f32.partialorder %v256, 0.0
      %vm261 = vcmp.ne.f32.partialorder %v257, 0.0
      %v262 = vmax.f32 %v253, 0.0
      %264 = vst [vmem:[#allocation1] ss:$2 sm:$0xff] %v262
      %v265 = vld.sshfl [vmem:[#allocation1] sm:$0xff pattern:$0x75316420]
      %v266 = vld.sshfl [vmem:[#allocation1 + $0x8] sm:$0xff pattern:$0x75316420]
      %269 = vrot.lane.b32.xlu0 %v265, 17
      %v270 = vpop.permute.xlu0 %269
      %271 = vrot.lane.b32.xlu0 %v266, 17
      %v272 = vpop.permute.xlu0 %271
      %v273 = vlaneseq
      %v274 = vand.u32 %v273, 127
      %vm275 = vcmp.lt.s32.totalorder %v274, 17
      %v276 = vsel %vm275, %v270, %v272
      %v277 = vsel %vm275, %v272, %v270
      %v278 = vsel %vm258, 1, 0
      %v279 = vsel %vm259, 1, 0
      %vm280 = vcmp.eq.s32.totalorder %v278, 1
      %vm281 = vcmp.eq.s32.totalorder %v279, 1
      %v284 = vrot.slane %v277, 1
      %v285 = vrot.slane %v276, 1
      %v286 = vrot.slane %v277, 2
      %v287 = vrot.slane %v276, 2
      %v288 = vrot.slane %v277, 3
      %v289 = vrot.slane %v276, 3
      %v298 = vsel %vm280, %v277, 0.0
      %v299 = vsel %vm281, %v276, 0.0
      %v300 = vsel %vm280, %v284, 0.0
      %v301 = vsel %vm281, %v285, 0.0
      %v302 = vsel %vm280, %v286, 0.0
      %v303 = vsel %vm281, %v287, 0.0
      %v304 = vsel %vm280, %v288, 0.0
      %v305 = vsel %vm281, %v289, 0.0
      %v306 = vld [vmem:[%s1] sm:$0x3]
      %v307 = vpack.c.bf16 %v298, %v298
      %v308 = vpack.c.bf16 %v299, %v299
      %v309 = vpack.c.bf16 %v300, %v300
      %v310 = vpack.c.bf16 %v301, %v301
      %v311 = vpack.c.bf16 %v302, %v302
      %v312 = vpack.c.bf16 %v303, %v303
      %v313 = vpack.c.bf16 %v304, %v304
      %v314 = vpack.c.bf16 %v305, %v305
      %315 = vst [vmem:[#allocation1] ss:$2 sm:$0xff] %v262
      %v316 = vld.sshfl [vmem:[#allocation1] sm:$0xff pattern:$0x75316420]
      %v317 = vld.sshfl [vmem:[#allocation1 + $0x8] sm:$0xff pattern:$0x75316420]
      %320 = vrot.lane.b32.xlu0 %v316, 16
      %v321 = vpop.permute.xlu0 %320
      %322 = vrot.lane.b32.xlu0 %v317, 16
      %v323 = vpop.permute.xlu0 %322
      %vm324 = vcmp.lt.s32.totalorder %v274, 16
      %v325 = vsel %vm324, %v321, %v323
      %v326 = vsel %vm324, %v323, %v321
      %v329 = vrot.slane %v326, 7
      %v330 = vrot.slane %v325, 7
      %v331 = vrot.slane %v326, 1
      %v332 = vrot.slane %v325, 1
      %v333 = vrot.slane %v326, 2
      %v334 = vrot.slane %v325, 2
      %v343 = vsel %vm280, %v329, 0.0
      %v344 = vsel %vm281, %v330, 0.0
      %v345 = vsel %vm280, %v326, 0.0
      %v346 = vsel %vm281, %v325, 0.0
      %v347 = vsel %vm280, %v331, 0.0
      %v348 = vsel %vm281, %v332, 0.0
      %v349 = vsel %vm280, %v333, 0.0
      %v350 = vsel %vm281, %v334, 0.0
      %s351 = scalar_lea.vmem %s1, 2
      %v352 = vld [vmem:[%s351] sm:$0x3]
      %v353 = vpack.c.bf16 %v343, %v343
      %v354 = vpack.c.bf16 %v344, %v344
      %v355 = vpack.c.bf16 %v345, %v345
      %v356 = vpack.c.bf16 %v346, %v346
      %v357 = vpack.c.bf16 %v347, %v347
      %v358 = vpack.c.bf16 %v348, %v348
      %v359 = vpack.c.bf16 %v349, %v349
      %v360 = vpack.c.bf16 %v350, %v350
      %v369 = vunpack.c.l.b16 %v353
      %v370 = vunpack.c.l.b16 %v354
      %v371 = vunpack.c.l.b16 %v355
      %v372 = vunpack.c.l.b16 %v356
      %v373 = vunpack.c.l.b16 %v357
      %v374 = vunpack.c.l.b16 %v358
      %v375 = vunpack.c.l.b16 %v359
      %v376 = vunpack.c.l.b16 %v360
      %v377 = vrot.slane %v369, 1
      %vm378 = vcmask 1041409
      %v379 = vsel %vm378, %v371, %v377
      %v380 = vrot.slane %v373, 7
      %vm381 = vcmask 1042434
      %v382 = vsel %vm381, %v380, %v379
      %v383 = vrot.slane %v375, 6
      %vm384 = vcmask 1043459
      %v385 = vsel %vm384, %v383, %v382
      %v386 = vrot.slane %v370, 1
      %v387 = vsel %vm378, %v372, %v386
      %v388 = vrot.slane %v374, 7
      %v389 = vsel %vm381, %v388, %v387
      %v390 = vrot.slane %v376, 6
      %v391 = vsel %vm384, %v390, %v389
      %v392 = vpack.c.b16 %v385, %v385
      %v393 = vpack.c.b16 %v391, %v391
      %vm394 = vcmask 31744
      %v396 = vsel %vm394, %v352, 0
      %vm398 = vcmask 1041408
      %v400 = vsel %vm398, %v392, 0
      %v403 = vsel %vm398, %v393, 0
      %405 = vmatpush.bf16.msra.mxu0 0
      %406 = vmatpush.bf16.msra.mxu0 0
      %407 = vmatpush.bf16.msra.mxu0 0
      %408 = vmatpush.bf16.msra.mxu0 0
      %409 = vmatpush.bf16.msra.mxu0 0
      %410 = vmatpush.bf16.msra.mxu0 0
      %411 = vmatpush.bf16.msra.mxu0 0
      %412 = vmatpush.bf16.msra.mxu0 %v400
      %413 = vmatmul.bf16.gmra.mxu0 %v396
      %v414 = vpop.f32.mrf.mxu0
      %v415 = vadd.f32 0.0, %v414
      %v416 = vpop.f32.mrf.mxu0
      %417 = vdwg.mxu0
      %418 = vmatpush.bf16.msra.mxu0 0
      %419 = vmatpush.bf16.msra.mxu0 0
      %420 = vmatpush.bf16.msra.mxu0 0
      %421 = vmatpush.bf16.msra.mxu0 0
      %422 = vmatpush.bf16.msra.mxu0 0
      %423 = vmatpush.bf16.msra.mxu0 0
      %424 = vmatpush.bf16.msra.mxu0 0
      %425 = vmatpush.bf16.msra.mxu0 %v403
      %426 = vmatmul.bf16.gmra.mxu0 %v396
      %v427 = vpop.f32.mrf.mxu0
      %v428 = vadd.f32 0.0, %v427
      %v429 = vpop.f32.mrf.mxu0
      %430 = vdwg.mxu0
      %v439 = vunpack.c.l.b16 %v307
      %v440 = vunpack.c.l.b16 %v308
      %v441 = vunpack.c.l.b16 %v309
      %v442 = vunpack.c.l.b16 %v310
      %v443 = vunpack.c.l.b16 %v311
      %v444 = vunpack.c.l.b16 %v312
      %v445 = vunpack.c.l.b16 %v313
      %v446 = vunpack.c.l.b16 %v314
      %v447 = vrot.slane %v441, 7
      %v448 = vsel %vm378, %v447, %v439
      %v449 = vrot.slane %v443, 6
      %v450 = vsel %vm381, %v449, %v448
      %v451 = vrot.slane %v445, 5
      %v452 = vsel %vm384, %v451, %v450
      %v453 = vrot.slane %v442, 7
      %v454 = vsel %vm378, %v453, %v440
      %v455 = vrot.slane %v444, 6
      %v456 = vsel %vm381, %v455, %v454
      %v457 = vrot.slane %v446, 5
      %v458 = vsel %vm384, %v457, %v456
      %v459 = vpack.c.b16 %v452, %v452
      %v460 = vpack.c.b16 %v458, %v458
      %v462 = vsel %vm394, %v306, 0
      %v465 = vsel %vm398, %v459, 0
      %v468 = vsel %vm398, %v460, 0
      %470 = vmatpush.bf16.msra.mxu0 0
      %471 = vmatpush.bf16.msra.mxu0 0
      %472 = vmatpush.bf16.msra.mxu0 0
      %473 = vmatpush.bf16.msra.mxu0 0
      %474 = vmatpush.bf16.msra.mxu0 0
      %475 = vmatpush.bf16.msra.mxu0 0
      %476 = vmatpush.bf16.msra.mxu0 0
      %477 = vmatpush.bf16.msra.mxu0 %v465
      %478 = vmatmul.bf16.gmra.mxu0 %v462
      %v479 = vpop.f32.mrf.mxu0
      %v480 = vadd.f32 %v415, %v479
      %v481 = vpop.f32.mrf.mxu0
      %482 = vdwg.mxu0
      %483 = vmatpush.bf16.msra.mxu0 0
      %484 = vmatpush.bf16.msra.mxu0 0
      %485 = vmatpush.bf16.msra.mxu0 0
      %486 = vmatpush.bf16.msra.mxu0 0
      %487 = vmatpush.bf16.msra.mxu0 0
      %488 = vmatpush.bf16.msra.mxu0 0
      %489 = vmatpush.bf16.msra.mxu0 0
      %490 = vmatpush.bf16.msra.mxu0 %v468
      %491 = vmatmul.bf16.gmra.mxu0 %v462
      %v492 = vpop.f32.mrf.mxu0
      %v493 = vadd.f32 %v428, %v492
      %v494 = vpop.f32.mrf.mxu0
      %495 = vdwg.mxu0
      %496 = vst [vmem:[#allocation1] ss:$2 sm:$0xff] %v262
      %v497 = vld.sshfl [vmem:[#allocation1] sm:$0xff pattern:$0x75316420]
      %v498 = vld.sshfl [vmem:[#allocation1 + $0x8] sm:$0xff pattern:$0x75316420]
      %501 = vrot.lane.b32.xlu0 %v497, 15
      %v502 = vpop.permute.xlu0 %501
      %503 = vrot.lane.b32.xlu0 %v498, 15
      %v504 = vpop.permute.xlu0 %503
      %vm505 = vcmp.lt.s32.totalorder %v274, 15
      %v506 = vsel %vm505, %v502, %v504
      %v507 = vsel %vm505, %v504, %v502
      %v510 = vrot.slane %v507, 6
      %v511 = vrot.slane %v506, 6
      %v512 = vrot.slane %v507, 7
      %v513 = vrot.slane %v506, 7
      %v514 = vrot.slane %v507, 1
      %v515 = vrot.slane %v506, 1
      %v524 = vsel %vm280, %v510, 0.0
      %v525 = vsel %vm281, %v511, 0.0
      %v526 = vsel %vm280, %v512, 0.0
      %v527 = vsel %vm281, %v513, 0.0
      %v528 = vsel %vm280, %v507, 0.0
      %v529 = vsel %vm281, %v506, 0.0
      %v530 = vsel %vm280, %v514, 0.0
      %v531 = vsel %vm281, %v515, 0.0
      %s532 = scalar_lea.vmem %s1, 4
      %v533 = vld [vmem:[%s532] sm:$0x3]
      %v534 = vpack.c.bf16 %v524, %v524
      %v535 = vpack.c.bf16 %v525, %v525
      %v536 = vpack.c.bf16 %v526, %v526
      %v537 = vpack.c.bf16 %v527, %v527
      %v538 = vpack.c.bf16 %v528, %v528
      %v539 = vpack.c.bf16 %v529, %v529
      %v540 = vpack.c.bf16 %v530, %v530
      %v541 = vpack.c.bf16 %v531, %v531
      %v550 = vunpack.c.l.b16 %v534
      %v551 = vunpack.c.l.b16 %v535
      %v552 = vunpack.c.l.b16 %v536
      %v553 = vunpack.c.l.b16 %v537
      %v554 = vunpack.c.l.b16 %v538
      %v555 = vunpack.c.l.b16 %v539
      %v556 = vunpack.c.l.b16 %v540
      %v557 = vunpack.c.l.b16 %v541
      %v558 = vrot.slane %v550, 2
      %v559 = vrot.slane %v552, 1
      %v560 = vsel %vm378, %v559, %v558
      %v561 = vsel %vm381, %v554, %v560
      %v562 = vrot.slane %v556, 7
      %v563 = vsel %vm384, %v562, %v561
      %v564 = vrot.slane %v551, 2
      %v565 = vrot.slane %v553, 1
      %v566 = vsel %vm378, %v565, %v564
      %v567 = vsel %vm381, %v555, %v566
      %v568 = vrot.slane %v557, 7
      %v569 = vsel %vm384, %v568, %v567
      %v570 = vpack.c.b16 %v563, %v563
      %v571 = vpack.c.b16 %v569, %v569
      %v573 = vsel %vm394, %v533, 0
      %v576 = vsel %vm398, %v570, 0
      %v579 = vsel %vm398, %v571, 0
      %581 = vmatpush.bf16.msra.mxu0 0
      %582 = vmatpush.bf16.msra.mxu0 0
      %583 = vmatpush.bf16.msra.mxu0 0
      %584 = vmatpush.bf16.msra.mxu0 0
      %585 = vmatpush.bf16.msra.mxu0 0
      %586 = vmatpush.bf16.msra.mxu0 0
      %587 = vmatpush.bf16.msra.mxu0 0
      %588 = vmatpush.bf16.msra.mxu0 %v576
      %589 = vmatmul.bf16.gmra.mxu0 %v573
      %v590 = vpop.f32.mrf.mxu0
      %v591 = vadd.f32 0.0, %v590
      %v592 = vpop.f32.mrf.mxu0
      %593 = vdwg.mxu0
      %594 = vmatpush.bf16.msra.mxu0 0
      %595 = vmatpush.bf16.msra.mxu0 0
      %596 = vmatpush.bf16.msra.mxu0 0
      %597 = vmatpush.bf16.msra.mxu0 0
      %598 = vmatpush.bf16.msra.mxu0 0
      %599 = vmatpush.bf16.msra.mxu0 0
      %600 = vmatpush.bf16.msra.mxu0 0
      %601 = vmatpush.bf16.msra.mxu0 %v579
      %602 = vmatmul.bf16.gmra.mxu0 %v573
      %v603 = vpop.f32.mrf.mxu0
      %v604 = vadd.f32 0.0, %v603
      %v605 = vpop.f32.mrf.mxu0
      %606 = vdwg.mxu0
      %v607 = vadd.f32 %v480, %v591
      %v608 = vadd.f32 %v493, %v604
      %609 = vst [vmem:[#allocation1] ss:$2 sm:$0xff] %v262
      %v610 = vld.sshfl [vmem:[#allocation1] sm:$0xff pattern:$0x75316420]
      %v611 = vld.sshfl [vmem:[#allocation1 + $0x8] sm:$0xff pattern:$0x75316420]
      %614 = vrot.lane.b32.xlu0 %v610, 1
      %v615 = vpop.permute.xlu0 %614
      %616 = vrot.lane.b32.xlu0 %v611, 1
      %v617 = vpop.permute.xlu0 %616
      %vm618 = vcmp.lt.s32.totalorder %v274, 1
      %v619 = vsel %vm618, %v615, %v617
      %v620 = vsel %vm618, %v617, %v615
      %v623 = vrot.slane %v620, 5
      %v624 = vrot.slane %v619, 5
      %v625 = vrot.slane %v620, 6
      %v626 = vrot.slane %v619, 6
      %v627 = vrot.slane %v620, 7
      %v628 = vrot.slane %v619, 7
      %v637 = vsel %vm280, %v623, 0.0
      %v638 = vsel %vm281, %v624, 0.0
      %v639 = vsel %vm280, %v625, 0.0
      %v640 = vsel %vm281, %v626, 0.0
      %v641 = vsel %vm280, %v627, 0.0
      %v642 = vsel %vm281, %v628, 0.0
      %v643 = vsel %vm280, %v620, 0.0
      %v644 = vsel %vm281, %v619, 0.0
      %s645 = scalar_lea.vmem %s1, 6
      %v646 = vld [vmem:[%s645] sm:$0x3]
      %v647 = vpack.c.bf16 %v637, %v637
      %v648 = vpack.c.bf16 %v638, %v638
      %v649 = vpack.c.bf16 %v639, %v639
      %v650 = vpack.c.bf16 %v640, %v640
      %v651 = vpack.c.bf16 %v641, %v641
      %v652 = vpack.c.bf16 %v642, %v642
      %v653 = vpack.c.bf16 %v643, %v643
      %v654 = vpack.c.bf16 %v644, %v644
      %v663 = vunpack.c.l.b16 %v647
      %v664 = vunpack.c.l.b16 %v648
      %v665 = vunpack.c.l.b16 %v649
      %v666 = vunpack.c.l.b16 %v650
      %v667 = vunpack.c.l.b16 %v651
      %v668 = vunpack.c.l.b16 %v652
      %v669 = vunpack.c.l.b16 %v653
      %v670 = vunpack.c.l.b16 %v654
      %v671 = vrot.slane %v663, 3
      %v672 = vrot.slane %v665, 2
      %v673 = vsel %vm378, %v672, %v671
      %v674 = vrot.slane %v667, 1
      %v675 = vsel %vm381, %v674, %v673
      %v676 = vsel %vm384, %v669, %v675
      %v677 = vrot.slane %v664, 3
      %v678 = vrot.slane %v666, 2
      %v679 = vsel %vm378, %v678, %v677
      %v680 = vrot.slane %v668, 1
      %v681 = vsel %vm381, %v680, %v679
      %v682 = vsel %vm384, %v670, %v681
      %v683 = vpack.c.b16 %v676, %v676
      %v684 = vpack.c.b16 %v682, %v682
      %v686 = vsel %vm394, %v646, 0
      %v689 = vsel %vm398, %v683, 0
      %v692 = vsel %vm398, %v684, 0
      %694 = vmatpush.bf16.msra.mxu0 0
      %695 = vmatpush.bf16.msra.mxu0 0
      %696 = vmatpush.bf16.msra.mxu0 0
      %697 = vmatpush.bf16.msra.mxu0 0
      %698 = vmatpush.bf16.msra.mxu0 0
      %699 = vmatpush.bf16.msra.mxu0 0
      %700 = vmatpush.bf16.msra.mxu0 0
      %701 = vmatpush.bf16.msra.mxu0 %v689
      %702 = vmatmul.bf16.gmra.mxu0 %v686
      %v703 = vpop.f32.mrf.mxu0
      %v704 = vadd.f32 0.0, %v703
      %v705 = vpop.f32.mrf.mxu0
      %706 = vdwg.mxu0
      %707 = vmatpush.bf16.msra.mxu0 0
      %708 = vmatpush.bf16.msra.mxu0 0
      %709 = vmatpush.bf16.msra.mxu0 0
      %710 = vmatpush.bf16.msra.mxu0 0
      %711 = vmatpush.bf16.msra.mxu0 0
      %712 = vmatpush.bf16.msra.mxu0 0
      %713 = vmatpush.bf16.msra.mxu0 0
      %714 = vmatpush.bf16.msra.mxu0 %v692
      %715 = vmatmul.bf16.gmra.mxu0 %v686
      %v716 = vpop.f32.mrf.mxu0
      %v717 = vadd.f32 0.0, %v716
      %v718 = vpop.f32.mrf.mxu0
      %719 = vdwg.mxu0
      %v720 = vadd.f32 %v607, %v704
      %v721 = vadd.f32 %v608, %v717
      %s722 = scalar_lea.vmem %s1, 8
      %v723 = vld [vmem:[%s722] sm:$0x3]
      %724 = vst [vmem:[#allocation1] ss:$2 sm:$0xff] %v262
      %v725 = vld.sshfl [vmem:[#allocation1] sm:$0xff pattern:$0x75316420]
      %v726 = vld.sshfl [vmem:[#allocation1 + $0x8] sm:$0xff pattern:$0x75316420]
      %v729 = vpack.c.bf16 %v725, %v725
      %v730 = vpack.c.bf16 %v726, %v726
      %v732 = vsel %vm394, %v723, 0
      %v735 = vsel %vm398, %v729, 0
      %v738 = vsel %vm398, %v730, 0
      %740 = vmatpush.bf16.msra.mxu0 0
      %741 = vmatpush.bf16.msra.mxu0 0
      %742 = vmatpush.bf16.msra.mxu0 0
      %743 = vmatpush.bf16.msra.mxu0 0
      %744 = vmatpush.bf16.msra.mxu0 0
      %745 = vmatpush.bf16.msra.mxu0 0
      %746 = vmatpush.bf16.msra.mxu0 0
      %747 = vmatpush.bf16.msra.mxu0 %v735
      %748 = vmatmul.bf16.gmra.mxu0 %v732
      %v749 = vpop.f32.mrf.mxu0
      %v750 = vadd.f32 0.0, %v749
      %v751 = vpop.f32.mrf.mxu0
      %752 = vdwg.mxu0
      %753 = vmatpush.bf16.msra.mxu0 0
      %754 = vmatpush.bf16.msra.mxu0 0
      %755 = vmatpush.bf16.msra.mxu0 0
      %756 = vmatpush.bf16.msra.mxu0 0
      %757 = vmatpush.bf16.msra.mxu0 0
      %758 = vmatpush.bf16.msra.mxu0 0
      %759 = vmatpush.bf16.msra.mxu0 0
      %760 = vmatpush.bf16.msra.mxu0 %v738
      %761 = vmatmul.bf16.gmra.mxu0 %v732
      %v762 = vpop.f32.mrf.mxu0
      %v763 = vadd.f32 0.0, %v762
      %v764 = vpop.f32.mrf.mxu0
      %765 = vdwg.mxu0
      %v766 = vadd.f32 %v720, %v750
      %v767 = vadd.f32 %v721, %v763
      %768 = vst [vmem:[#allocation1] ss:$2 sm:$0xff] %v262
      %v769 = vld.sshfl [vmem:[#allocation1] sm:$0xff pattern:$0x75316420]
      %v770 = vld.sshfl [vmem:[#allocation1 + $0x8] sm:$0xff pattern:$0x75316420]
      %773 = vrot.lane.b32.xlu0 %v769, 127
      %v774 = vpop.permute.xlu0 %773
      %775 = vrot.lane.b32.xlu0 %v770, 127
      %v776 = vpop.permute.xlu0 %775
      %vm777 = vcmp.lt.s32.totalorder %v274, 127
      %v778 = vsel %vm777, %v774, %v776
      %v779 = vsel %vm777, %v776, %v774
      %v782 = vrot.slane %v778, 3
      %v783 = vrot.slane %v779, 3
      %v784 = vrot.slane %v778, 4
      %v785 = vrot.slane %v779, 4
      %v786 = vrot.slane %v778, 5
      %v787 = vrot.slane %v779, 5
      %v788 = vrot.slane %v778, 6
      %v789 = vrot.slane %v779, 6
      %v798 = vsel %vm280, %v782, 0.0
      %v799 = vsel %vm281, %v783, 0.0
      %v800 = vsel %vm280, %v784, 0.0
      %v801 = vsel %vm281, %v785, 0.0
      %v802 = vsel %vm280, %v786, 0.0
      %v803 = vsel %vm281, %v787, 0.0
      %v804 = vsel %vm280, %v788, 0.0
      %v805 = vsel %vm281, %v789, 0.0
      %s806 = scalar_lea.vmem %s1, 10
      %v807 = vld [vmem:[%s806] sm:$0x3]
      %v808 = vpack.c.bf16 %v798, %v798
      %v809 = vpack.c.bf16 %v799, %v799
      %v810 = vpack.c.bf16 %v800, %v800
      %v811 = vpack.c.bf16 %v801, %v801
      %v812 = vpack.c.bf16 %v802, %v802
      %v813 = vpack.c.bf16 %v803, %v803
      %v814 = vpack.c.bf16 %v804, %v804
      %v815 = vpack.c.bf16 %v805, %v805
      %v824 = vunpack.c.l.b16 %v808
      %v825 = vunpack.c.l.b16 %v809
      %v826 = vunpack.c.l.b16 %v810
      %v827 = vunpack.c.l.b16 %v811
      %v828 = vunpack.c.l.b16 %v812
      %v829 = vunpack.c.l.b16 %v813
      %v830 = vunpack.c.l.b16 %v814
      %v831 = vunpack.c.l.b16 %v815
      %v832 = vrot.slane %v824, 5
      %v833 = vrot.slane %v826, 4
      %v834 = vsel %vm378, %v833, %v832
      %v835 = vrot.slane %v828, 3
      %v836 = vsel %vm381, %v835, %v834
      %v837 = vrot.slane %v830, 2
      %v838 = vsel %vm384, %v837, %v836
      %v839 = vrot.slane %v825, 5
      %v840 = vrot.slane %v827, 4
      %v841 = vsel %vm378, %v840, %v839
      %v842 = vrot.slane %v829, 3
      %v843 = vsel %vm381, %v842, %v841
      %v844 = vrot.slane %v831, 2
      %v845 = vsel %vm384, %v844, %v843
      %v846 = vpack.c.b16 %v838, %v838
      %v847 = vpack.c.b16 %v845, %v845
      %v849 = vsel %vm394, %v807, 0
      %v852 = vsel %vm398, %v846, 0
      %v855 = vsel %vm398, %v847, 0
      %857 = vmatpush.bf16.msra.mxu0 0
      %858 = vmatpush.bf16.msra.mxu0 0
      %859 = vmatpush.bf16.msra.mxu0 0
      %860 = vmatpush.bf16.msra.mxu0 0
      %861 = vmatpush.bf16.msra.mxu0 0
      %862 = vmatpush.bf16.msra.mxu0 0
      %863 = vmatpush.bf16.msra.mxu0 0
      %864 = vmatpush.bf16.msra.mxu0 %v852
      %865 = vmatmul.bf16.gmra.mxu0 %v849
      %v866 = vpop.f32.mrf.mxu0
      %v867 = vadd.f32 0.0, %v866
      %v868 = vpop.f32.mrf.mxu0
      %869 = vdwg.mxu0
      %870 = vmatpush.bf16.msra.mxu0 0
      %871 = vmatpush.bf16.msra.mxu0 0
      %872 = vmatpush.bf16.msra.mxu0 0
      %873 = vmatpush.bf16.msra.mxu0 0
      %874 = vmatpush.bf16.msra.mxu0 0
      %875 = vmatpush.bf16.msra.mxu0 0
      %876 = vmatpush.bf16.msra.mxu0 0
      %877 = vmatpush.bf16.msra.mxu0 %v855
      %878 = vmatmul.bf16.gmra.mxu0 %v849
      %v879 = vpop.f32.mrf.mxu0
      %v880 = vadd.f32 0.0, %v879
      %v881 = vpop.f32.mrf.mxu0
      %882 = vdwg.mxu0
      %v883 = vadd.f32 %v766, %v867
      %v884 = vadd.f32 %v767, %v880
      %885 = vst [vmem:[#allocation1] ss:$2 sm:$0xff] %v262
      %v886 = vld.sshfl [vmem:[#allocation1] sm:$0xff pattern:$0x75316420]
      %v887 = vld.sshfl [vmem:[#allocation1 + $0x8] sm:$0xff pattern:$0x75316420]
      %890 = vrot.lane.b32.xlu0 %v886, 113
      %v891 = vpop.permute.xlu0 %890
      %892 = vrot.lane.b32.xlu0 %v887, 113
      %v893 = vpop.permute.xlu0 %892
      %vm894 = vcmp.lt.s32.totalorder %v274, 113
      %v895 = vsel %vm894, %v891, %v893
      %v896 = vsel %vm894, %v893, %v891
      %v899 = vrot.slane %v895, 2
      %v900 = vrot.slane %v896, 2
      %v901 = vrot.slane %v895, 3
      %v902 = vrot.slane %v896, 3
      %v903 = vrot.slane %v895, 4
      %v904 = vrot.slane %v896, 4
      %v905 = vrot.slane %v895, 5
      %v906 = vrot.slane %v896, 5
      %v915 = vsel %vm280, %v899, 0.0
      %v916 = vsel %vm281, %v900, 0.0
      %v917 = vsel %vm280, %v901, 0.0
      %v918 = vsel %vm281, %v902, 0.0
      %v919 = vsel %vm280, %v903, 0.0
      %v920 = vsel %vm281, %v904, 0.0
      %v921 = vsel %vm280, %v905, 0.0
      %v922 = vsel %vm281, %v906, 0.0
      %s923 = scalar_lea.vmem %s1, 12
      %v924 = vld [vmem:[%s923] sm:$0x3]
      %v925 = vpack.c.bf16 %v915, %v915
      %v926 = vpack.c.bf16 %v916, %v916
      %v927 = vpack.c.bf16 %v917, %v917
      %v928 = vpack.c.bf16 %v918, %v918
      %v929 = vpack.c.bf16 %v919, %v919
      %v930 = vpack.c.bf16 %v920, %v920
      %v931 = vpack.c.bf16 %v921, %v921
      %v932 = vpack.c.bf16 %v922, %v922
      %v941 = vunpack.c.l.b16 %v925
      %v942 = vunpack.c.l.b16 %v926
      %v943 = vunpack.c.l.b16 %v927
      %v944 = vunpack.c.l.b16 %v928
      %v945 = vunpack.c.l.b16 %v929
      %v946 = vunpack.c.l.b16 %v930
      %v947 = vunpack.c.l.b16 %v931
      %v948 = vunpack.c.l.b16 %v932
      %v949 = vrot.slane %v941, 6
      %v950 = vrot.slane %v943, 5
      %v951 = vsel %vm378, %v950, %v949
      %v952 = vrot.slane %v945, 4
      %v953 = vsel %vm381, %v952, %v951
      %v954 = vrot.slane %v947, 3
      %v955 = vsel %vm384, %v954, %v953
      %v956 = vrot.slane %v942, 6
      %v957 = vrot.slane %v944, 5
      %v958 = vsel %vm378, %v957, %v956
      %v959 = vrot.slane %v946, 4
      %v960 = vsel %vm381, %v959, %v958
      %v961 = vrot.slane %v948, 3
      %v962 = vsel %vm384, %v961, %v960
      %v963 = vpack.c.b16 %v955, %v955
      %v964 = vpack.c.b16 %v962, %v962
      %v966 = vsel %vm394, %v924, 0
      %v969 = vsel %vm398, %v963, 0
      %v972 = vsel %vm398, %v964, 0
      %974 = vmatpush.bf16.msra.mxu0 0
      %975 = vmatpush.bf16.msra.mxu0 0
      %976 = vmatpush.bf16.msra.mxu0 0
      %977 = vmatpush.bf16.msra.mxu0 0
      %978 = vmatpush.bf16.msra.mxu0 0
      %979 = vmatpush.bf16.msra.mxu0 0
      %980 = vmatpush.bf16.msra.mxu0 0
      %981 = vmatpush.bf16.msra.mxu0 %v969
      %982 = vmatmul.bf16.gmra.mxu0 %v966
      %v983 = vpop.f32.mrf.mxu0
      %v984 = vadd.f32 0.0, %v983
      %v985 = vpop.f32.mrf.mxu0
      %986 = vdwg.mxu0
      %987 = vmatpush.bf16.msra.mxu0 0
      %988 = vmatpush.bf16.msra.mxu0 0
      %989 = vmatpush.bf16.msra.mxu0 0
      %990 = vmatpush.bf16.msra.mxu0 0
      %991 = vmatpush.bf16.msra.mxu0 0
      %992 = vmatpush.bf16.msra.mxu0 0
      %993 = vmatpush.bf16.msra.mxu0 0
      %994 = vmatpush.bf16.msra.mxu0 %v972
      %995 = vmatmul.bf16.gmra.mxu0 %v966
      %v996 = vpop.f32.mrf.mxu0
      %v997 = vadd.f32 0.0, %v996
      %v998 = vpop.f32.mrf.mxu0
      %999 = vdwg.mxu0
      %v1000 = vadd.f32 %v883, %v984
      %v1001 = vadd.f32 %v884, %v997
      %1002 = vst [vmem:[#allocation1] ss:$2 sm:$0xff] %v262
      %v1003 = vld.sshfl [vmem:[#allocation1] sm:$0xff pattern:$0x75316420]
      %v1004 = vld.sshfl [vmem:[#allocation1 + $0x8] sm:$0xff pattern:$0x75316420]
      %1007 = vrot.lane.b32.xlu0 %v1003, 112
      %v1008 = vpop.permute.xlu0 %1007
      %1009 = vrot.lane.b32.xlu0 %v1004, 112
      %v1010 = vpop.permute.xlu0 %1009
      %vm1011 = vcmp.lt.s32.totalorder %v274, 112
      %v1012 = vsel %vm1011, %v1008, %v1010
      %v1013 = vsel %vm1011, %v1010, %v1008
      %v1016 = vrot.slane %v1012, 1
      %v1017 = vrot.slane %v1013, 1
      %v1018 = vrot.slane %v1012, 2
      %v1019 = vrot.slane %v1013, 2
      %v1020 = vrot.slane %v1012, 3
      %v1021 = vrot.slane %v1013, 3
      %v1022 = vrot.slane %v1012, 4
      %v1023 = vrot.slane %v1013, 4
      %v1032 = vsel %vm280, %v1016, 0.0
      %v1033 = vsel %vm281, %v1017, 0.0
      %v1034 = vsel %vm280, %v1018, 0.0
      %v1035 = vsel %vm281, %v1019, 0.0
      %v1036 = vsel %vm280, %v1020, 0.0
      %v1037 = vsel %vm281, %v1021, 0.0
      %v1038 = vsel %vm280, %v1022, 0.0
      %v1039 = vsel %vm281, %v1023, 0.0
      %s1040 = scalar_lea.vmem %s1, 14
      %v1041 = vld [vmem:[%s1040] sm:$0x3]
      %v1042 = vpack.c.bf16 %v1032, %v1032
      %v1043 = vpack.c.bf16 %v1033, %v1033
      %v1044 = vpack.c.bf16 %v1034, %v1034
      %v1045 = vpack.c.bf16 %v1035, %v1035
      %v1046 = vpack.c.bf16 %v1036, %v1036
      %v1047 = vpack.c.bf16 %v1037, %v1037
      %v1048 = vpack.c.bf16 %v1038, %v1038
      %v1049 = vpack.c.bf16 %v1039, %v1039
      %v1058 = vunpack.c.l.b16 %v1042
      %v1059 = vunpack.c.l.b16 %v1043
      %v1060 = vunpack.c.l.b16 %v1044
      %v1061 = vunpack.c.l.b16 %v1045
      %v1062 = vunpack.c.l.b16 %v1046
      %v1063 = vunpack.c.l.b16 %v1047
      %v1064 = vunpack.c.l.b16 %v1048
      %v1065 = vunpack.c.l.b16 %v1049
      %v1066 = vrot.slane %v1058, 7
      %v1067 = vrot.slane %v1060, 6
      %v1068 = vsel %vm378, %v1067, %v1066
      %v1069 = vrot.slane %v1062, 5
      %v1070 = vsel %vm381, %v1069, %v1068
      %v1071 = vrot.slane %v1064, 4
      %v1072 = vsel %vm384, %v1071, %v1070
      %v1073 = vrot.slane %v1059, 7
      %v1074 = vrot.slane %v1061, 6
      %v1075 = vsel %vm378, %v1074, %v1073
      %v1076 = vrot.slane %v1063, 5
      %v1077 = vsel %vm381, %v1076, %v1075
      %v1078 = vrot.slane %v1065, 4
      %v1079 = vsel %vm384, %v1078, %v1077
      %v1080 = vpack.c.b16 %v1072, %v1072
      %v1081 = vpack.c.b16 %v1079, %v1079
      %v1083 = vsel %vm394, %v1041, 0
      %v1086 = vsel %vm398, %v1080, 0
      %v1089 = vsel %vm398, %v1081, 0
      %1091 = vmatpush.bf16.msra.mxu0 0
      %1092 = vmatpush.bf16.msra.mxu0 0
      %1093 = vmatpush.bf16.msra.mxu0 0
      %1094 = vmatpush.bf16.msra.mxu0 0
      %1095 = vmatpush.bf16.msra.mxu0 0
      %1096 = vmatpush.bf16.msra.mxu0 0
      %1097 = vmatpush.bf16.msra.mxu0 0
      %1098 = vmatpush.bf16.msra.mxu0 %v1086
      %1099 = vmatmul.bf16.gmra.mxu0 %v1083
      %v1100 = vpop.f32.mrf.mxu0
      %v1101 = vadd.f32 0.0, %v1100
      %v1102 = vpop.f32.mrf.mxu0
      %1103 = vdwg.mxu0
      %1104 = vmatpush.bf16.msra.mxu0 0
      %1105 = vmatpush.bf16.msra.mxu0 0
      %1106 = vmatpush.bf16.msra.mxu0 0
      %1107 = vmatpush.bf16.msra.mxu0 0
      %1108 = vmatpush.bf16.msra.mxu0 0
      %1109 = vmatpush.bf16.msra.mxu0 0
      %1110 = vmatpush.bf16.msra.mxu0 0
      %1111 = vmatpush.bf16.msra.mxu0 %v1089
      %1112 = vmatmul.bf16.gmra.mxu0 %v1083
      %v1113 = vpop.f32.mrf.mxu0
      %v1114 = vadd.f32 0.0, %v1113
      %v1115 = vpop.f32.mrf.mxu0
      %1116 = vdwg.mxu0
      %v1117 = vadd.f32 %v1000, %v1101
      %v1118 = vadd.f32 %v1001, %v1114
      %1119 = vst [vmem:[#allocation1] ss:$2 sm:$0xff] %v262
      %v1120 = vld.sshfl [vmem:[#allocation1] sm:$0xff pattern:$0x75316420]
      %v1121 = vld.sshfl [vmem:[#allocation1 + $0x8] sm:$0xff pattern:$0x75316420]
      %1124 = vrot.lane.b32.xlu0 %v1120, 111
      %v1125 = vpop.permute.xlu0 %1124
      %1126 = vrot.lane.b32.xlu0 %v1121, 111
      %v1127 = vpop.permute.xlu0 %1126
      %vm1128 = vcmp.lt.s32.totalorder %v274, 111
      %v1129 = vsel %vm1128, %v1125, %v1127
      %v1130 = vsel %vm1128, %v1127, %v1125
      %v1131 = vsel %vm260, 1, 0
      %v1132 = vsel %vm261, 1, 0
      %vm1133 = vcmp.eq.s32.totalorder %v1131, 1
      %vm1134 = vcmp.eq.s32.totalorder %v1132, 1
      %v1137 = vrot.slane %v1129, 1
      %v1138 = vrot.slane %v1130, 1
      %v1139 = vrot.slane %v1129, 2
      %v1140 = vrot.slane %v1130, 2
      %v1141 = vrot.slane %v1129, 3
      %v1142 = vrot.slane %v1130, 3
      %v1151 = vsel %vm1133, %v1129, 0.0
      %v1152 = vsel %vm1134, %v1130, 0.0
      %v1153 = vsel %vm1133, %v1137, 0.0
      %v1154 = vsel %vm1134, %v1138, 0.0
      %v1155 = vsel %vm1133, %v1139, 0.0
      %v1156 = vsel %vm1134, %v1140, 0.0
      %v1157 = vsel %vm1133, %v1141, 0.0
      %v1158 = vsel %vm1134, %v1142, 0.0
      %s1159 = scalar_lea.vmem %s1, 16
      %v1160 = vld [vmem:[%s1159] sm:$0x3]
      %v1161 = vpack.c.bf16 %v1151, %v1151
      %v1162 = vpack.c.bf16 %v1152, %v1152
      %v1163 = vpack.c.bf16 %v1153, %v1153
      %v1164 = vpack.c.bf16 %v1154, %v1154
      %v1165 = vpack.c.bf16 %v1155, %v1155
      %v1166 = vpack.c.bf16 %v1156, %v1156
      %v1167 = vpack.c.bf16 %v1157, %v1157
      %v1168 = vpack.c.bf16 %v1158, %v1158
      %v1177 = vunpack.c.l.b16 %v1161
      %v1178 = vunpack.c.l.b16 %v1162
      %v1179 = vunpack.c.l.b16 %v1163
      %v1180 = vunpack.c.l.b16 %v1164
      %v1181 = vunpack.c.l.b16 %v1165
      %v1182 = vunpack.c.l.b16 %v1166
      %v1183 = vunpack.c.l.b16 %v1167
      %v1184 = vunpack.c.l.b16 %v1168
      %v1185 = vrot.slane %v1179, 7
      %v1186 = vsel %vm378, %v1185, %v1177
      %v1187 = vrot.slane %v1181, 6
      %v1188 = vsel %vm381, %v1187, %v1186
      %v1189 = vrot.slane %v1183, 5
      %v1190 = vsel %vm384, %v1189, %v1188
      %v1191 = vrot.slane %v1180, 7
      %v1192 = vsel %vm378, %v1191, %v1178
      %v1193 = vrot.slane %v1182, 6
      %v1194 = vsel %vm381, %v1193, %v1192
      %v1195 = vrot.slane %v1184, 5
      %v1196 = vsel %vm384, %v1195, %v1194
      %v1197 = vpack.c.b16 %v1190, %v1190
      %v1198 = vpack.c.b16 %v1196, %v1196
      %v1200 = vsel %vm394, %v1160, 0
      %v1203 = vsel %vm398, %v1197, 0
      %v1206 = vsel %vm398, %v1198, 0
      %1208 = vmatpush.bf16.msra.mxu0 0
      %1209 = vmatpush.bf16.msra.mxu0 0
      %1210 = vmatpush.bf16.msra.mxu0 0
      %1211 = vmatpush.bf16.msra.mxu0 0
      %1212 = vmatpush.bf16.msra.mxu0 0
      %1213 = vmatpush.bf16.msra.mxu0 0
      %1214 = vmatpush.bf16.msra.mxu0 0
      %1215 = vmatpush.bf16.msra.mxu0 %v1203
      %1216 = vmatmul.bf16.gmra.mxu0 %v1200
      %v1217 = vpop.f32.mrf.mxu0
      %v1218 = vadd.f32 0.0, %v1217
      %v1219 = vpop.f32.mrf.mxu0
      %1220 = vdwg.mxu0
      %1221 = vmatpush.bf16.msra.mxu0 0
      %1222 = vmatpush.bf16.msra.mxu0 0
      %1223 = vmatpush.bf16.msra.mxu0 0
      %1224 = vmatpush.bf16.msra.mxu0 0
      %1225 = vmatpush.bf16.msra.mxu0 0
      %1226 = vmatpush.bf16.msra.mxu0 0
      %1227 = vmatpush.bf16.msra.mxu0 0
      %1228 = vmatpush.bf16.msra.mxu0 %v1206
      %1229 = vmatmul.bf16.gmra.mxu0 %v1200
      %v1230 = vpop.f32.mrf.mxu0
      %v1231 = vadd.f32 0.0, %v1230
      %v1232 = vpop.f32.mrf.mxu0
      %1233 = vdwg.mxu0
      %v1234 = vadd.f32 %v1117, %v1218
      %v1235 = vadd.f32 %v1118, %v1231
      %v1236 = vld [vmem:[%s2] sm:$0xf]
      %1238 = vset.pattern.permute.xlu0 0
      %1239 = vperm.xlu0 %1238, %v1236
      %v1240 = vpop.permute.xlu0 %1239
      %v1242 = vadd.f32 %v1234, %v1240
      %v1243 = vadd.f32 %v1235, %v1240
      %v1244 = vmax.f32 %v1242, 0.0
      %v1245 = vmax.f32 %v1243, 0.0
      %1246 = vrot.lane.b32.xlu0 %v1244, 17
      %v1247 = vpop.permute.xlu0 %1246
      %1248 = vrot.lane.b32.xlu0 %v1245, 17
      %v1249 = vpop.permute.xlu0 %1248
      %v1250 = vsel %vm275, %v1247, %v1249
      %v1251 = vsel %vm275, %v1249, %v1247
      %v1254 = vrot.slane %v1251, 1
      %v1255 = vrot.slane %v1250, 1
      %v1256 = vrot.slane %v1251, 2
      %v1257 = vrot.slane %v1250, 2
      %v1258 = vrot.slane %v1251, 3
      %v1259 = vrot.slane %v1250, 3
      %v1268 = vsel %vm280, %v1251, 0.0
      %v1269 = vsel %vm281, %v1250, 0.0
      %v1270 = vsel %vm280, %v1254, 0.0
      %v1271 = vsel %vm281, %v1255, 0.0
      %v1272 = vsel %vm280, %v1256, 0.0
      %v1273 = vsel %vm281, %v1257, 0.0
      %v1274 = vsel %vm280, %v1258, 0.0
      %v1275 = vsel %vm281, %v1259, 0.0
      %v1276 = vld [vmem:[%s3] sm:$0x3]
      %v1277 = vpack.c.bf16 %v1268, %v1268
      %v1278 = vpack.c.bf16 %v1269, %v1269
      %v1279 = vpack.c.bf16 %v1270, %v1270
      %v1280 = vpack.c.bf16 %v1271, %v1271
      %v1281 = vpack.c.bf16 %v1272, %v1272
      %v1282 = vpack.c.bf16 %v1273, %v1273
      %v1283 = vpack.c.bf16 %v1274, %v1274
      %v1284 = vpack.c.bf16 %v1275, %v1275
      %1285 = vrot.lane.b32.xlu0 %v1244, 16
      %v1286 = vpop.permute.xlu0 %1285
      %1287 = vrot.lane.b32.xlu0 %v1245, 16
      %v1288 = vpop.permute.xlu0 %1287
      %v1289 = vsel %vm324, %v1286, %v1288
      %v1290 = vsel %vm324, %v1288, %v1286
      %v1293 = vrot.slane %v1290, 7
      %v1294 = vrot.slane %v1289, 7
      %v1295 = vrot.slane %v1290, 1
      %v1296 = vrot.slane %v1289, 1
      %v1297 = vrot.slane %v1290, 2
      %v1298 = vrot.slane %v1289, 2
      %v1307 = vsel %vm280, %v1293, 0.0
      %v1308 = vsel %vm281, %v1294, 0.0
      %v1309 = vsel %vm280, %v1290, 0.0
      %v1310 = vsel %vm281, %v1289, 0.0
      %v1311 = vsel %vm280, %v1295, 0.0
      %v1312 = vsel %vm281, %v1296, 0.0
      %v1313 = vsel %vm280, %v1297, 0.0
      %v1314 = vsel %vm281, %v1298, 0.0
      %s1315 = scalar_lea.vmem %s3, 2
      %v1316 = vld [vmem:[%s1315] sm:$0x3]
      %v1317 = vpack.c.bf16 %v1307, %v1307
      %v1318 = vpack.c.bf16 %v1308, %v1308
      %v1319 = vpack.c.bf16 %v1309, %v1309
      %v1320 = vpack.c.bf16 %v1310, %v1310
      %v1321 = vpack.c.bf16 %v1311, %v1311
      %v1322 = vpack.c.bf16 %v1312, %v1312
      %v1323 = vpack.c.bf16 %v1313, %v1313
      %v1324 = vpack.c.bf16 %v1314, %v1314
      %v1333 = vunpack.c.l.b16 %v1317
      %v1334 = vunpack.c.l.b16 %v1318
      %v1335 = vunpack.c.l.b16 %v1319
      %v1336 = vunpack.c.l.b16 %v1320
      %v1337 = vunpack.c.l.b16 %v1321
      %v1338 = vunpack.c.l.b16 %v1322
      %v1339 = vunpack.c.l.b16 %v1323
      %v1340 = vunpack.c.l.b16 %v1324
      %v1341 = vrot.slane %v1333, 1
      %v1342 = vsel %vm378, %v1335, %v1341
      %v1343 = vrot.slane %v1337, 7
      %v1344 = vsel %vm381, %v1343, %v1342
      %v1345 = vrot.slane %v1339, 6
      %v1346 = vsel %vm384, %v1345, %v1344
      %v1347 = vrot.slane %v1334, 1
      %v1348 = vsel %vm378, %v1336, %v1347
      %v1349 = vrot.slane %v1338, 7
      %v1350 = vsel %vm381, %v1349, %v1348
      %v1351 = vrot.slane %v1340, 6
      %v1352 = vsel %vm384, %v1351, %v1350
      %v1353 = vpack.c.b16 %v1346, %v1346
      %v1354 = vpack.c.b16 %v1352, %v1352
      %v1356 = vsel %vm394, %v1316, 0
      %v1359 = vsel %vm398, %v1353, 0
      %v1362 = vsel %vm398, %v1354, 0
      %1364 = vmatpush.bf16.msra.mxu0 0
      %1365 = vmatpush.bf16.msra.mxu0 0
      %1366 = vmatpush.bf16.msra.mxu0 0
      %1367 = vmatpush.bf16.msra.mxu0 0
      %1368 = vmatpush.bf16.msra.mxu0 0
      %1369 = vmatpush.bf16.msra.mxu0 0
      %1370 = vmatpush.bf16.msra.mxu0 0
      %1371 = vmatpush.bf16.msra.mxu0 %v1359
      %1372 = vmatmul.bf16.gmra.mxu0 %v1356
      %v1373 = vpop.f32.mrf.mxu0
      %v1374 = vadd.f32 0.0, %v1373
      %v1375 = vpop.f32.mrf.mxu0
      %1376 = vdwg.mxu0
      %1377 = vmatpush.bf16.msra.mxu0 0
      %1378 = vmatpush.bf16.msra.mxu0 0
      %1379 = vmatpush.bf16.msra.mxu0 0
      %1380 = vmatpush.bf16.msra.mxu0 0
      %1381 = vmatpush.bf16.msra.mxu0 0
      %1382 = vmatpush.bf16.msra.mxu0 0
      %1383 = vmatpush.bf16.msra.mxu0 0
      %1384 = vmatpush.bf16.msra.mxu0 %v1362
      %1385 = vmatmul.bf16.gmra.mxu0 %v1356
      %v1386 = vpop.f32.mrf.mxu0
      %v1387 = vadd.f32 0.0, %v1386
      %v1388 = vpop.f32.mrf.mxu0
      %1389 = vdwg.mxu0
      %v1398 = vunpack.c.l.b16 %v1277
      %v1399 = vunpack.c.l.b16 %v1278
      %v1400 = vunpack.c.l.b16 %v1279
      %v1401 = vunpack.c.l.b16 %v1280
      %v1402 = vunpack.c.l.b16 %v1281
      %v1403 = vunpack.c.l.b16 %v1282
      %v1404 = vunpack.c.l.b16 %v1283
      %v1405 = vunpack.c.l.b16 %v1284
      %v1406 = vrot.slane %v1400, 7
      %v1407 = vsel %vm378, %v1406, %v1398
      %v1408 = vrot.slane %v1402, 6
      %v1409 = vsel %vm381, %v1408, %v1407
      %v1410 = vrot.slane %v1404, 5
      %v1411 = vsel %vm384, %v1410, %v1409
      %v1412 = vrot.slane %v1401, 7
      %v1413 = vsel %vm378, %v1412, %v1399
      %v1414 = vrot.slane %v1403, 6
      %v1415 = vsel %vm381, %v1414, %v1413
      %v1416 = vrot.slane %v1405, 5
      %v1417 = vsel %vm384, %v1416, %v1415
      %v1418 = vpack.c.b16 %v1411, %v1411
      %v1419 = vpack.c.b16 %v1417, %v1417
      %v1421 = vsel %vm394, %v1276, 0
      %v1424 = vsel %vm398, %v1418, 0
      %v1427 = vsel %vm398, %v1419, 0
      %1429 = vmatpush.bf16.msra.mxu0 0
      %1430 = vmatpush.bf16.msra.mxu0 0
      %1431 = vmatpush.bf16.msra.mxu0 0
      %1432 = vmatpush.bf16.msra.mxu0 0
      %1433 = vmatpush.bf16.msra.mxu0 0
      %1434 = vmatpush.bf16.msra.mxu0 0
      %1435 = vmatpush.bf16.msra.mxu0 0
      %1436 = vmatpush.bf16.msra.mxu0 %v1424
      %1437 = vmatmul.bf16.gmra.mxu0 %v1421
      %v1438 = vpop.f32.mrf.mxu0
      %v1439 = vadd.f32 %v1374, %v1438
      %v1440 = vpop.f32.mrf.mxu0
      %1441 = vdwg.mxu0
      %1442 = vmatpush.bf16.msra.mxu0 0
      %1443 = vmatpush.bf16.msra.mxu0 0
      %1444 = vmatpush.bf16.msra.mxu0 0
      %1445 = vmatpush.bf16.msra.mxu0 0
      %1446 = vmatpush.bf16.msra.mxu0 0
      %1447 = vmatpush.bf16.msra.mxu0 0
      %1448 = vmatpush.bf16.msra.mxu0 0
      %1449 = vmatpush.bf16.msra.mxu0 %v1427
      %1450 = vmatmul.bf16.gmra.mxu0 %v1421
      %v1451 = vpop.f32.mrf.mxu0
      %v1452 = vadd.f32 %v1387, %v1451
      %v1453 = vpop.f32.mrf.mxu0
      %1454 = vdwg.mxu0
      %1455 = vrot.lane.b32.xlu0 %v1244, 15
      %v1456 = vpop.permute.xlu0 %1455
      %1457 = vrot.lane.b32.xlu0 %v1245, 15
      %v1458 = vpop.permute.xlu0 %1457
      %v1459 = vsel %vm505, %v1456, %v1458
      %v1460 = vsel %vm505, %v1458, %v1456
      %v1463 = vrot.slane %v1460, 6
      %v1464 = vrot.slane %v1459, 6
      %v1465 = vrot.slane %v1460, 7
      %v1466 = vrot.slane %v1459, 7
      %v1467 = vrot.slane %v1460, 1
      %v1468 = vrot.slane %v1459, 1
      %v1477 = vsel %vm280, %v1463, 0.0
      %v1478 = vsel %vm281, %v1464, 0.0
      %v1479 = vsel %vm280, %v1465, 0.0
      %v1480 = vsel %vm281, %v1466, 0.0
      %v1481 = vsel %vm280, %v1460, 0.0
      %v1482 = vsel %vm281, %v1459, 0.0
      %v1483 = vsel %vm280, %v1467, 0.0
      %v1484 = vsel %vm281, %v1468, 0.0
      %s1485 = scalar_lea.vmem %s3, 4
      %v1486 = vld [vmem:[%s1485] sm:$0x3]
      %v1487 = vpack.c.bf16 %v1477, %v1477
      %v1488 = vpack.c.bf16 %v1478, %v1478
      %v1489 = vpack.c.bf16 %v1479, %v1479
      %v1490 = vpack.c.bf16 %v1480, %v1480
      %v1491 = vpack.c.bf16 %v1481, %v1481
      %v1492 = vpack.c.bf16 %v1482, %v1482
      %v1493 = vpack.c.bf16 %v1483, %v1483
      %v1494 = vpack.c.bf16 %v1484, %v1484
      %v1503 = vunpack.c.l.b16 %v1487
      %v1504 = vunpack.c.l.b16 %v1488
      %v1505 = vunpack.c.l.b16 %v1489
      %v1506 = vunpack.c.l.b16 %v1490
      %v1507 = vunpack.c.l.b16 %v1491
      %v1508 = vunpack.c.l.b16 %v1492
      %v1509 = vunpack.c.l.b16 %v1493
      %v1510 = vunpack.c.l.b16 %v1494
      %v1511 = vrot.slane %v1503, 2
      %v1512 = vrot.slane %v1505, 1
      %v1513 = vsel %vm378, %v1512, %v1511
      %v1514 = vsel %vm381, %v1507, %v1513
      %v1515 = vrot.slane %v1509, 7
      %v1516 = vsel %vm384, %v1515, %v1514
      %v1517 = vrot.slane %v1504, 2
      %v1518 = vrot.slane %v1506, 1
      %v1519 = vsel %vm378, %v1518, %v1517
      %v1520 = vsel %vm381, %v1508, %v1519
      %v1521 = vrot.slane %v1510, 7
      %v1522 = vsel %vm384, %v1521, %v1520
      %v1523 = vpack.c.b16 %v1516, %v1516
      %v1524 = vpack.c.b16 %v1522, %v1522
      %v1526 = vsel %vm394, %v1486, 0
      %v1529 = vsel %vm398, %v1523, 0
      %v1532 = vsel %vm398, %v1524, 0
      %1534 = vmatpush.bf16.msra.mxu0 0
      %1535 = vmatpush.bf16.msra.mxu0 0
      %1536 = vmatpush.bf16.msra.mxu0 0
      %1537 = vmatpush.bf16.msra.mxu0 0
      %1538 = vmatpush.bf16.msra.mxu0 0
      %1539 = vmatpush.bf16.msra.mxu0 0
      %1540 = vmatpush.bf16.msra.mxu0 0
      %1541 = vmatpush.bf16.msra.mxu0 %v1529
      %1542 = vmatmul.bf16.gmra.mxu0 %v1526
      %v1543 = vpop.f32.mrf.mxu0
      %v1544 = vadd.f32 0.0, %v1543
      %v1545 = vpop.f32.mrf.mxu0
      %1546 = vdwg.mxu0
      %1547 = vmatpush.bf16.msra.mxu0 0
      %1548 = vmatpush.bf16.msra.mxu0 0
      %1549 = vmatpush.bf16.msra.mxu0 0
      %1550 = vmatpush.bf16.msra.mxu0 0
      %1551 = vmatpush.bf16.msra.mxu0 0
      %1552 = vmatpush.bf16.msra.mxu0 0
      %1553 = vmatpush.bf16.msra.mxu0 0
      %1554 = vmatpush.bf16.msra.mxu0 %v1532
      %1555 = vmatmul.bf16.gmra.mxu0 %v1526
      %v1556 = vpop.f32.mrf.mxu0
      %v1557 = vadd.f32 0.0, %v1556
      %v1558 = vpop.f32.mrf.mxu0
      %1559 = vdwg.mxu0
      %v1560 = vadd.f32 %v1439, %v1544
      %v1561 = vadd.f32 %v1452, %v1557
      %1562 = vrot.lane.b32.xlu0 %v1244, 1
      %v1563 = vpop.permute.xlu0 %1562
      %1564 = vrot.lane.b32.xlu0 %v1245, 1
      %v1565 = vpop.permute.xlu0 %1564
      %v1566 = vsel %vm618, %v1563, %v1565
      %v1567 = vsel %vm618, %v1565, %v1563
      %v1570 = vrot.slane %v1567, 5
      %v1571 = vrot.slane %v1566, 5
      %v1572 = vrot.slane %v1567, 6
      %v1573 = vrot.slane %v1566, 6
      %v1574 = vrot.slane %v1567, 7
      %v1575 = vrot.slane %v1566, 7
      %v1584 = vsel %vm280, %v1570, 0.0
      %v1585 = vsel %vm281, %v1571, 0.0
      %v1586 = vsel %vm280, %v1572, 0.0
      %v1587 = vsel %vm281, %v1573, 0.0
      %v1588 = vsel %vm280, %v1574, 0.0
      %v1589 = vsel %vm281, %v1575, 0.0
      %v1590 = vsel %vm280, %v1567, 0.0
      %v1591 = vsel %vm281, %v1566, 0.0
      %s1592 = scalar_lea.vmem %s3, 6
      %v1593 = vld [vmem:[%s1592] sm:$0x3]
      %v1594 = vpack.c.bf16 %v1584, %v1584
      %v1595 = vpack.c.bf16 %v1585, %v1585
      %v1596 = vpack.c.bf16 %v1586, %v1586
      %v1597 = vpack.c.bf16 %v1587, %v1587
      %v1598 = vpack.c.bf16 %v1588, %v1588
      %v1599 = vpack.c.bf16 %v1589, %v1589
      %v1600 = vpack.c.bf16 %v1590, %v1590
      %v1601 = vpack.c.bf16 %v1591, %v1591
      %v1610 = vunpack.c.l.b16 %v1594
      %v1611 = vunpack.c.l.b16 %v1595
      %v1612 = vunpack.c.l.b16 %v1596
      %v1613 = vunpack.c.l.b16 %v1597
      %v1614 = vunpack.c.l.b16 %v1598
      %v1615 = vunpack.c.l.b16 %v1599
      %v1616 = vunpack.c.l.b16 %v1600
      %v1617 = vunpack.c.l.b16 %v1601
      %v1618 = vrot.slane %v1610, 3
      %v1619 = vrot.slane %v1612, 2
      %v1620 = vsel %vm378, %v1619, %v1618
      %v1621 = vrot.slane %v1614, 1
      %v1622 = vsel %vm381, %v1621, %v1620
      %v1623 = vsel %vm384, %v1616, %v1622
      %v1624 = vrot.slane %v1611, 3
      %v1625 = vrot.slane %v1613, 2
      %v1626 = vsel %vm378, %v1625, %v1624
      %v1627 = vrot.slane %v1615, 1
      %v1628 = vsel %vm381, %v1627, %v1626
      %v1629 = vsel %vm384, %v1617, %v1628
      %v1630 = vpack.c.b16 %v1623, %v1623
      %v1631 = vpack.c.b16 %v1629, %v1629
      %v1633 = vsel %vm394, %v1593, 0
      %v1636 = vsel %vm398, %v1630, 0
      %v1639 = vsel %vm398, %v1631, 0
      %1641 = vmatpush.bf16.msra.mxu0 0
      %1642 = vmatpush.bf16.msra.mxu0 0
      %1643 = vmatpush.bf16.msra.mxu0 0
      %1644 = vmatpush.bf16.msra.mxu0 0
      %1645 = vmatpush.bf16.msra.mxu0 0
      %1646 = vmatpush.bf16.msra.mxu0 0
      %1647 = vmatpush.bf16.msra.mxu0 0
      %1648 = vmatpush.bf16.msra.mxu0 %v1636
      %1649 = vmatmul.bf16.gmra.mxu0 %v1633
      %v1650 = vpop.f32.mrf.mxu0
      %v1651 = vadd.f32 0.0, %v1650
      %v1652 = vpop.f32.mrf.mxu0
      %1653 = vdwg.mxu0
      %1654 = vmatpush.bf16.msra.mxu0 0
      %1655 = vmatpush.bf16.msra.mxu0 0
      %1656 = vmatpush.bf16.msra.mxu0 0
      %1657 = vmatpush.bf16.msra.mxu0 0
      %1658 = vmatpush.bf16.msra.mxu0 0
      %1659 = vmatpush.bf16.msra.mxu0 0
      %1660 = vmatpush.bf16.msra.mxu0 0
      %1661 = vmatpush.bf16.msra.mxu0 %v1639
      %1662 = vmatmul.bf16.gmra.mxu0 %v1633
      %v1663 = vpop.f32.mrf.mxu0
      %v1664 = vadd.f32 0.0, %v1663
      %v1665 = vpop.f32.mrf.mxu0
      %1666 = vdwg.mxu0
      %v1667 = vadd.f32 %v1560, %v1651
      %v1668 = vadd.f32 %v1561, %v1664
      %s1669 = scalar_lea.vmem %s3, 8
      %v1670 = vld [vmem:[%s1669] sm:$0x3]
      %v1671 = vpack.c.bf16 %v1244, %v1244
      %v1672 = vpack.c.bf16 %v1245, %v1245
      %v1674 = vsel %vm394, %v1670, 0
      %v1677 = vsel %vm398, %v1671, 0
      %v1680 = vsel %vm398, %v1672, 0
      %1682 = vmatpush.bf16.msra.mxu0 0
      %1683 = vmatpush.bf16.msra.mxu0 0
      %1684 = vmatpush.bf16.msra.mxu0 0
      %1685 = vmatpush.bf16.msra.mxu0 0
      %1686 = vmatpush.bf16.msra.mxu0 0
      %1687 = vmatpush.bf16.msra.mxu0 0
      %1688 = vmatpush.bf16.msra.mxu0 0
      %1689 = vmatpush.bf16.msra.mxu0 %v1677
      %1690 = vmatmul.bf16.gmra.mxu0 %v1674
      %v1691 = vpop.f32.mrf.mxu0
      %v1692 = vadd.f32 0.0, %v1691
      %v1693 = vpop.f32.mrf.mxu0
      %1694 = vdwg.mxu0
      %1695 = vmatpush.bf16.msra.mxu0 0
      %1696 = vmatpush.bf16.msra.mxu0 0
      %1697 = vmatpush.bf16.msra.mxu0 0
      %1698 = vmatpush.bf16.msra.mxu0 0
      %1699 = vmatpush.bf16.msra.mxu0 0
      %1700 = vmatpush.bf16.msra.mxu0 0
      %1701 = vmatpush.bf16.msra.mxu0 0
      %1702 = vmatpush.bf16.msra.mxu0 %v1680
      %1703 = vmatmul.bf16.gmra.mxu0 %v1674
      %v1704 = vpop.f32.mrf.mxu0
      %v1705 = vadd.f32 0.0, %v1704
      %v1706 = vpop.f32.mrf.mxu0
      %1707 = vdwg.mxu0
      %v1708 = vadd.f32 %v1667, %v1692
      %v1709 = vadd.f32 %v1668, %v1705
      %1710 = vrot.lane.b32.xlu0 %v1244, 127
      %v1711 = vpop.permute.xlu0 %1710
      %1712 = vrot.lane.b32.xlu0 %v1245, 127
      %v1713 = vpop.permute.xlu0 %1712
      %v1714 = vsel %vm777, %v1711, %v1713
      %v1715 = vsel %vm777, %v1713, %v1711
      %v1718 = vrot.slane %v1714, 3
      %v1719 = vrot.slane %v1715, 3
      %v1720 = vrot.slane %v1714, 4
      %v1721 = vrot.slane %v1715, 4
      %v1722 = vrot.slane %v1714, 5
      %v1723 = vrot.slane %v1715, 5
      %v1724 = vrot.slane %v1714, 6
      %v1725 = vrot.slane %v1715, 6
      %v1734 = vsel %vm280, %v1718, 0.0
      %v1735 = vsel %vm281, %v1719, 0.0
      %v1736 = vsel %vm280, %v1720, 0.0
      %v1737 = vsel %vm281, %v1721, 0.0
      %v1738 = vsel %vm280, %v1722, 0.0
      %v1739 = vsel %vm281, %v1723, 0.0
      %v1740 = vsel %vm280, %v1724, 0.0
      %v1741 = vsel %vm281, %v1725, 0.0
      %s1742 = scalar_lea.vmem %s3, 10
      %v1743 = vld [vmem:[%s1742] sm:$0x3]
      %v1744 = vpack.c.bf16 %v1734, %v1734
      %v1745 = vpack.c.bf16 %v1735, %v1735
      %v1746 = vpack.c.bf16 %v1736, %v1736
      %v1747 = vpack.c.bf16 %v1737, %v1737
      %v1748 = vpack.c.bf16 %v1738, %v1738
      %v1749 = vpack.c.bf16 %v1739, %v1739
      %v1750 = vpack.c.bf16 %v1740, %v1740
      %v1751 = vpack.c.bf16 %v1741, %v1741
      %v1760 = vunpack.c.l.b16 %v1744
      %v1761 = vunpack.c.l.b16 %v1745
      %v1762 = vunpack.c.l.b16 %v1746
      %v1763 = vunpack.c.l.b16 %v1747
      %v1764 = vunpack.c.l.b16 %v1748
      %v1765 = vunpack.c.l.b16 %v1749
      %v1766 = vunpack.c.l.b16 %v1750
      %v1767 = vunpack.c.l.b16 %v1751
      %v1768 = vrot.slane %v1760, 5
      %v1769 = vrot.slane %v1762, 4
      %v1770 = vsel %vm378, %v1769, %v1768
      %v1771 = vrot.slane %v1764, 3
      %v1772 = vsel %vm381, %v1771, %v1770
      %v1773 = vrot.slane %v1766, 2
      %v1774 = vsel %vm384, %v1773, %v1772
      %v1775 = vrot.slane %v1761, 5
      %v1776 = vrot.slane %v1763, 4
      %v1777 = vsel %vm378, %v1776, %v1775
      %v1778 = vrot.slane %v1765, 3
      %v1779 = vsel %vm381, %v1778, %v1777
      %v1780 = vrot.slane %v1767, 2
      %v1781 = vsel %vm384, %v1780, %v1779
      %v1782 = vpack.c.b16 %v1774, %v1774
      %v1783 = vpack.c.b16 %v1781, %v1781
      %v1785 = vsel %vm394, %v1743, 0
      %v1788 = vsel %vm398, %v1782, 0
      %v1791 = vsel %vm398, %v1783, 0
      %1793 = vmatpush.bf16.msra.mxu0 0
      %1794 = vmatpush.bf16.msra.mxu0 0
      %1795 = vmatpush.bf16.msra.mxu0 0
      %1796 = vmatpush.bf16.msra.mxu0 0
      %1797 = vmatpush.bf16.msra.mxu0 0
      %1798 = vmatpush.bf16.msra.mxu0 0
      %1799 = vmatpush.bf16.msra.mxu0 0
      %1800 = vmatpush.bf16.msra.mxu0 %v1788
      %1801 = vmatmul.bf16.gmra.mxu0 %v1785
      %v1802 = vpop.f32.mrf.mxu0
      %v1803 = vadd.f32 0.0, %v1802
      %v1804 = vpop.f32.mrf.mxu0
      %1805 = vdwg.mxu0
      %1806 = vmatpush.bf16.msra.mxu0 0
      %1807 = vmatpush.bf16.msra.mxu0 0
      %1808 = vmatpush.bf16.msra.mxu0 0
      %1809 = vmatpush.bf16.msra.mxu0 0
      %1810 = vmatpush.bf16.msra.mxu0 0
      %1811 = vmatpush.bf16.msra.mxu0 0
      %1812 = vmatpush.bf16.msra.mxu0 0
      %1813 = vmatpush.bf16.msra.mxu0 %v1791
      %1814 = vmatmul.bf16.gmra.mxu0 %v1785
      %v1815 = vpop.f32.mrf.mxu0
      %v1816 = vadd.f32 0.0, %v1815
      %v1817 = vpop.f32.mrf.mxu0
      %1818 = vdwg.mxu0
      %v1819 = vadd.f32 %v1708, %v1803
      %v1820 = vadd.f32 %v1709, %v1816
      %1821 = vrot.lane.b32.xlu0 %v1244, 113
      %v1822 = vpop.permute.xlu0 %1821
      %1823 = vrot.lane.b32.xlu0 %v1245, 113
      %v1824 = vpop.permute.xlu0 %1823
      %v1825 = vsel %vm894, %v1822, %v1824
      %v1826 = vsel %vm894, %v1824, %v1822
      %v1829 = vrot.slane %v1825, 2
      %v1830 = vrot.slane %v1826, 2
      %v1831 = vrot.slane %v1825, 3
      %v1832 = vrot.slane %v1826, 3
      %v1833 = vrot.slane %v1825, 4
      %v1834 = vrot.slane %v1826, 4
      %v1835 = vrot.slane %v1825, 5
      %v1836 = vrot.slane %v1826, 5
      %v1845 = vsel %vm280, %v1829, 0.0
      %v1846 = vsel %vm281, %v1830, 0.0
      %v1847 = vsel %vm280, %v1831, 0.0
      %v1848 = vsel %vm281, %v1832, 0.0
      %v1849 = vsel %vm280, %v1833, 0.0
      %v1850 = vsel %vm281, %v1834, 0.0
      %v1851 = vsel %vm280, %v1835, 0.0
      %v1852 = vsel %vm281, %v1836, 0.0
      %s1853 = scalar_lea.vmem %s3, 12
      %v1854 = vld [vmem:[%s1853] sm:$0x3]
      %v1855 = vpack.c.bf16 %v1845, %v1845
      %v1856 = vpack.c.bf16 %v1846, %v1846
      %v1857 = vpack.c.bf16 %v1847, %v1847
      %v1858 = vpack.c.bf16 %v1848, %v1848
      %v1859 = vpack.c.bf16 %v1849, %v1849
      %v1860 = vpack.c.bf16 %v1850, %v1850
      %v1861 = vpack.c.bf16 %v1851, %v1851
      %v1862 = vpack.c.bf16 %v1852, %v1852
      %v1871 = vunpack.c.l.b16 %v1855
      %v1872 = vunpack.c.l.b16 %v1856
      %v1873 = vunpack.c.l.b16 %v1857
      %v1874 = vunpack.c.l.b16 %v1858
      %v1875 = vunpack.c.l.b16 %v1859
      %v1876 = vunpack.c.l.b16 %v1860
      %v1877 = vunpack.c.l.b16 %v1861
      %v1878 = vunpack.c.l.b16 %v1862
      %v1879 = vrot.slane %v1871, 6
      %v1880 = vrot.slane %v1873, 5
      %v1881 = vsel %vm378, %v1880, %v1879
      %v1882 = vrot.slane %v1875, 4
      %v1883 = vsel %vm381, %v1882, %v1881
      %v1884 = vrot.slane %v1877, 3
      %v1885 = vsel %vm384, %v1884, %v1883
      %v1886 = vrot.slane %v1872, 6
      %v1887 = vrot.slane %v1874, 5
      %v1888 = vsel %vm378, %v1887, %v1886
      %v1889 = vrot.slane %v1876, 4
      %v1890 = vsel %vm381, %v1889, %v1888
      %v1891 = vrot.slane %v1878, 3
      %v1892 = vsel %vm384, %v1891, %v1890
      %v1893 = vpack.c.b16 %v1885, %v1885
      %v1894 = vpack.c.b16 %v1892, %v1892
      %v1896 = vsel %vm394, %v1854, 0
      %v1899 = vsel %vm398, %v1893, 0
      %v1902 = vsel %vm398, %v1894, 0
      %1904 = vmatpush.bf16.msra.mxu0 0
      %1905 = vmatpush.bf16.msra.mxu0 0
      %1906 = vmatpush.bf16.msra.mxu0 0
      %1907 = vmatpush.bf16.msra.mxu0 0
      %1908 = vmatpush.bf16.msra.mxu0 0
      %1909 = vmatpush.bf16.msra.mxu0 0
      %1910 = vmatpush.bf16.msra.mxu0 0
      %1911 = vmatpush.bf16.msra.mxu0 %v1899
      %1912 = vmatmul.bf16.gmra.mxu0 %v1896
      %v1913 = vpop.f32.mrf.mxu0
      %v1914 = vadd.f32 0.0, %v1913
      %v1915 = vpop.f32.mrf.mxu0
      %1916 = vdwg.mxu0
      %1917 = vmatpush.bf16.msra.mxu0 0
      %1918 = vmatpush.bf16.msra.mxu0 0
      %1919 = vmatpush.bf16.msra.mxu0 0
      %1920 = vmatpush.bf16.msra.mxu0 0
      %1921 = vmatpush.bf16.msra.mxu0 0
      %1922 = vmatpush.bf16.msra.mxu0 0
      %1923 = vmatpush.bf16.msra.mxu0 0
      %1924 = vmatpush.bf16.msra.mxu0 %v1902
      %1925 = vmatmul.bf16.gmra.mxu0 %v1896
      %v1926 = vpop.f32.mrf.mxu0
      %v1927 = vadd.f32 0.0, %v1926
      %v1928 = vpop.f32.mrf.mxu0
      %1929 = vdwg.mxu0
      %v1930 = vadd.f32 %v1819, %v1914
      %v1931 = vadd.f32 %v1820, %v1927
      %1932 = vrot.lane.b32.xlu0 %v1244, 112
      %v1933 = vpop.permute.xlu0 %1932
      %1934 = vrot.lane.b32.xlu0 %v1245, 112
      %v1935 = vpop.permute.xlu0 %1934
      %v1936 = vsel %vm1011, %v1933, %v1935
      %v1937 = vsel %vm1011, %v1935, %v1933
      %v1940 = vrot.slane %v1936, 1
      %v1941 = vrot.slane %v1937, 1
      %v1942 = vrot.slane %v1936, 2
      %v1943 = vrot.slane %v1937, 2
      %v1944 = vrot.slane %v1936, 3
      %v1945 = vrot.slane %v1937, 3
      %v1946 = vrot.slane %v1936, 4
      %v1947 = vrot.slane %v1937, 4
      %v1956 = vsel %vm280, %v1940, 0.0
      %v1957 = vsel %vm281, %v1941, 0.0
      %v1958 = vsel %vm280, %v1942, 0.0
      %v1959 = vsel %vm281, %v1943, 0.0
      %v1960 = vsel %vm280, %v1944, 0.0
      %v1961 = vsel %vm281, %v1945, 0.0
      %v1962 = vsel %vm280, %v1946, 0.0
      %v1963 = vsel %vm281, %v1947, 0.0
      %s1964 = scalar_lea.vmem %s3, 14
      %v1965 = vld [vmem:[%s1964] sm:$0x3]
      %v1966 = vpack.c.bf16 %v1956, %v1956
      %v1967 = vpack.c.bf16 %v1957, %v1957
      %v1968 = vpack.c.bf16 %v1958, %v1958
      %v1969 = vpack.c.bf16 %v1959, %v1959
      %v1970 = vpack.c.bf16 %v1960, %v1960
      %v1971 = vpack.c.bf16 %v1961, %v1961
      %v1972 = vpack.c.bf16 %v1962, %v1962
      %v1973 = vpack.c.bf16 %v1963, %v1963
      %v1982 = vunpack.c.l.b16 %v1966
      %v1983 = vunpack.c.l.b16 %v1967
      %v1984 = vunpack.c.l.b16 %v1968
      %v1985 = vunpack.c.l.b16 %v1969
      %v1986 = vunpack.c.l.b16 %v1970
      %v1987 = vunpack.c.l.b16 %v1971
      %v1988 = vunpack.c.l.b16 %v1972
      %v1989 = vunpack.c.l.b16 %v1973
      %v1990 = vrot.slane %v1982, 7
      %v1991 = vrot.slane %v1984, 6
      %v1992 = vsel %vm378, %v1991, %v1990
      %v1993 = vrot.slane %v1986, 5
      %v1994 = vsel %vm381, %v1993, %v1992
      %v1995 = vrot.slane %v1988, 4
      %v1996 = vsel %vm384, %v1995, %v1994
      %v1997 = vrot.slane %v1983, 7
      %v1998 = vrot.slane %v1985, 6
      %v1999 = vsel %vm378, %v1998, %v1997
      %v2000 = vrot.slane %v1987, 5
      %v2001 = vsel %vm381, %v2000, %v1999
      %v2002 = vrot.slane %v1989, 4
      %v2003 = vsel %vm384, %v2002, %v2001
      %v2004 = vpack.c.b16 %v1996, %v1996
      %v2005 = vpack.c.b16 %v2003, %v2003
      %v2007 = vsel %vm394, %v1965, 0
      %v2010 = vsel %vm398, %v2004, 0
      %v2013 = vsel %vm398, %v2005, 0
      %2015 = vmatpush.bf16.msra.mxu0 0
      %2016 = vmatpush.bf16.msra.mxu0 0
      %2017 = vmatpush.bf16.msra.mxu0 0
      %2018 = vmatpush.bf16.msra.mxu0 0
      %2019 = vmatpush.bf16.msra.mxu0 0
      %2020 = vmatpush.bf16.msra.mxu0 0
      %2021 = vmatpush.bf16.msra.mxu0 0
      %2022 = vmatpush.bf16.msra.mxu0 %v2010
      %2023 = vmatmul.bf16.gmra.mxu0 %v2007
      %v2024 = vpop.f32.mrf.mxu0
      %v2025 = vadd.f32 0.0, %v2024
      %v2026 = vpop.f32.mrf.mxu0
      %2027 = vdwg.mxu0
      %2028 = vmatpush.bf16.msra.mxu0 0
      %2029 = vmatpush.bf16.msra.mxu0 0
      %2030 = vmatpush.bf16.msra.mxu0 0
      %2031 = vmatpush.bf16.msra.mxu0 0
      %2032 = vmatpush.bf16.msra.mxu0 0
      %2033 = vmatpush.bf16.msra.mxu0 0
      %2034 = vmatpush.bf16.msra.mxu0 0
      %2035 = vmatpush.bf16.msra.mxu0 %v2013
      %2036 = vmatmul.bf16.gmra.mxu0 %v2007
      %v2037 = vpop.f32.mrf.mxu0
      %v2038 = vadd.f32 0.0, %v2037
      %v2039 = vpop.f32.mrf.mxu0
      %2040 = vdwg.mxu0
      %v2041 = vadd.f32 %v1930, %v2025
      %v2042 = vadd.f32 %v1931, %v2038
      %2043 = vrot.lane.b32.xlu0 %v1244, 111
      %v2044 = vpop.permute.xlu0 %2043
      %2045 = vrot.lane.b32.xlu0 %v1245, 111
      %v2046 = vpop.permute.xlu0 %2045
      %v2047 = vsel %vm1128, %v2044, %v2046
      %v2048 = vsel %vm1128, %v2046, %v2044
      %v2051 = vrot.slane %v2047, 1
      %v2052 = vrot.slane %v2048, 1
      %v2053 = vrot.slane %v2047, 2
      %v2054 = vrot.slane %v2048, 2
      %v2055 = vrot.slane %v2047, 3
      %v2056 = vrot.slane %v2048, 3
      %v2065 = vsel %vm1133, %v2047, 0.0
      %v2066 = vsel %vm1134, %v2048, 0.0
      %v2067 = vsel %vm1133, %v2051, 0.0
      %v2068 = vsel %vm1134, %v2052, 0.0
      %v2069 = vsel %vm1133, %v2053, 0.0
      %v2070 = vsel %vm1134, %v2054, 0.0
      %v2071 = vsel %vm1133, %v2055, 0.0
      %v2072 = vsel %vm1134, %v2056, 0.0
      %s2073 = scalar_lea.vmem %s3, 16
      %v2074 = vld [vmem:[%s2073] sm:$0x3]
      %v2075 = vpack.c.bf16 %v2065, %v2065
      %v2076 = vpack.c.bf16 %v2066, %v2066
      %v2077 = vpack.c.bf16 %v2067, %v2067
      %v2078 = vpack.c.bf16 %v2068, %v2068
      %v2079 = vpack.c.bf16 %v2069, %v2069
      %v2080 = vpack.c.bf16 %v2070, %v2070
      %v2081 = vpack.c.bf16 %v2071, %v2071
      %v2082 = vpack.c.bf16 %v2072, %v2072
      %v2091 = vunpack.c.l.b16 %v2075
      %v2092 = vunpack.c.l.b16 %v2076
      %v2093 = vunpack.c.l.b16 %v2077
      %v2094 = vunpack.c.l.b16 %v2078
      %v2095 = vunpack.c.l.b16 %v2079
      %v2096 = vunpack.c.l.b16 %v2080
      %v2097 = vunpack.c.l.b16 %v2081
      %v2098 = vunpack.c.l.b16 %v2082
      %v2099 = vrot.slane %v2093, 7
      %v2100 = vsel %vm378, %v2099, %v2091
      %v2101 = vrot.slane %v2095, 6
      %v2102 = vsel %vm381, %v2101, %v2100
      %v2103 = vrot.slane %v2097, 5
      %v2104 = vsel %vm384, %v2103, %v2102
      %v2105 = vrot.slane %v2094, 7
      %v2106 = vsel %vm378, %v2105, %v2092
      %v2107 = vrot.slane %v2096, 6
      %v2108 = vsel %vm381, %v2107, %v2106
      %v2109 = vrot.slane %v2098, 5
      %v2110 = vsel %vm384, %v2109, %v2108
      %v2111 = vpack.c.b16 %v2104, %v2104
      %v2112 = vpack.c.b16 %v2110, %v2110
      %v2114 = vsel %vm394, %v2074, 0
      %v2117 = vsel %vm398, %v2111, 0
      %v2120 = vsel %vm398, %v2112, 0
      %2122 = vmatpush.bf16.msra.mxu0 0
      %2123 = vmatpush.bf16.msra.mxu0 0
      %2124 = vmatpush.bf16.msra.mxu0 0
      %2125 = vmatpush.bf16.msra.mxu0 0
      %2126 = vmatpush.bf16.msra.mxu0 0
      %2127 = vmatpush.bf16.msra.mxu0 0
      %2128 = vmatpush.bf16.msra.mxu0 0
      %2129 = vmatpush.bf16.msra.mxu0 %v2117
      %2130 = vmatmul.bf16.gmra.mxu0 %v2114
      %v2131 = vpop.f32.mrf.mxu0
      %v2132 = vadd.f32 0.0, %v2131
      %v2133 = vpop.f32.mrf.mxu0
      %2134 = vdwg.mxu0
      %2135 = vmatpush.bf16.msra.mxu0 0
      %2136 = vmatpush.bf16.msra.mxu0 0
      %2137 = vmatpush.bf16.msra.mxu0 0
      %2138 = vmatpush.bf16.msra.mxu0 0
      %2139 = vmatpush.bf16.msra.mxu0 0
      %2140 = vmatpush.bf16.msra.mxu0 0
      %2141 = vmatpush.bf16.msra.mxu0 0
      %2142 = vmatpush.bf16.msra.mxu0 %v2120
      %2143 = vmatmul.bf16.gmra.mxu0 %v2114
      %v2144 = vpop.f32.mrf.mxu0
      %v2145 = vadd.f32 0.0, %v2144
      %v2146 = vpop.f32.mrf.mxu0
      %2147 = vdwg.mxu0
      %v2148 = vadd.f32 %v2041, %v2132
      %v2149 = vadd.f32 %v2042, %v2145
      %v2150 = vld [vmem:[%s4] sm:$0xf]
      %2152 = vset.pattern.permute.xlu0 0
      %2153 = vperm.xlu0 %2152, %v2150
      %v2154 = vpop.permute.xlu0 %2153
      %v2156 = vadd.f32 %v2148, %v2154
      %v2157 = vadd.f32 %v2149, %v2154
      %2159 = vst [vmem:[#allocation1] ss:$2 sm:$0xff] %v253
      %v2160 = vld.sshfl [vmem:[#allocation1] sm:$0xff pattern:$0x75316420]
      %v2161 = vld.sshfl [vmem:[#allocation1 + $0x8] sm:$0xff pattern:$0x75316420]
      %v2164 = vadd.f32 %v2156, %v2160
      %v2165 = vadd.f32 %v2157, %v2161
      %v2168 = vrot.slane %v2165, 4
      %vm2169 = vcmask 1043456
      %v2170 = vsel %vm2169, %v2164, %v2168
      %2172 = vst [vmem:[%s251] sm:$0xff] %v2170
      %p2173 = scmp.lt.s32.totalorder %s17, 1
      %s2174 = scalar_select %p2173, %s17, 1
      %s2175 = smul.addr %s2174, 2
      %s2176 = smul.addr %s2175, 4
      %s2177 = scalar_lea.vmem %s6, %s2176
      // Predicated region
      $region45: #{residual_conv_unit.1} parent=43 // pred_check
        %p2178 = pneg %p166
      $region46: #{residual_conv_unit.1} parent=43 // pred_check_branch
        %2180 = sbr.rel (%p2178) target = $region48
      $region47: #{residual_conv_unit.1} parent=43 // pred_region
        _
      $region48: #{residual_conv_unit.1} parent=43 // pred_fallthru
        _
    $region44: #{residual_conv_unit.1} parent=5 // pred_fallthru
      _
    %p2181 = scmp.le.s32.totalorder 2, %s12
    // Predicated region
    $region49: #{residual_conv_unit.1} parent=5 // pred_check
      %p2182 = pneg %p2181
    $region50: #{residual_conv_unit.1} parent=5 // pred_check_branch
      %2184 = sbr.rel (%p2182) target = $region52
    $region51: #{residual_conv_unit.1} parent=5 // pred_region
      %s2185 = ssub.s32 %s12, 2
      // Predicated region
      $region53: #{residual_conv_unit.1} parent=51 // pred_check
        %p2186 = pneg %p172
      $region54: #{residual_conv_unit.1} parent=51 // pred_check_branch
        %2188 = sbr.rel (%p2186) target = $region56
      $region55: #{residual_conv_unit.1} parent=51 // pred_region
        %p2189 = scmp.lt.s32.totalorder %s18, 1
        %s2190 = scalar_select %p2189, %s18, 1
        %s2191 = smul.addr %s2190, 2
        %s2192 = smul.addr %s2191, 4
        %s2193 = scalar_lea.vmem %s6, %s2192
      $region56: #{residual_conv_unit.1} parent=51 // pred_fallthru
        _
    $region52: #{residual_conv_unit.1} parent=5 // pred_fallthru
      _
  $region6: #{residual_conv_unit.1} parent=0 // loop_footer
    %s16 = sadd.s32 1, %s12
  $region7: #{residual_conv_unit.1} parent=0 // loop_footer_branch
    %11 = sbr.rel target = $region3
  $region8: #{residual_conv_unit.1} parent=0 // loop_exit
    _

</llo_original>
